<compile_context>
chip_gen: v5e
topology: v5e:2x2
jax: 0.10.0
libtpu: 0.0.40
codegen_flags: <defaults>
</compile_context>

<pallas_src>
import functools

import jax
import jax.numpy as jnp
from jax.experimental import pallas as pl
from jax.experimental.pallas import tpu as pltpu


# MXU input dtype for the conv dots. jnp.float32 keeps exact parity with the
# PyTorch reference; switch to jnp.bfloat16 to reach the bf16 MXU peak on
# v6e/v7x (accumulation stays f32 via preferred_element_type).
MXU_COMPUTE_DTYPE = jnp.float32


# ---------------------------------------------------------------------------
# In-kernel im2col via lane rotations + boundary masks.
# ---------------------------------------------------------------------------
def _im2col_3x3(img, col, row, H, W):
    """Build the (9*C, H*W) im2col matrix of a flattened (C, H*W) image.

    Each 3x3 tap is a lane rotation (pltpu.roll) of the flat image; the
    1-pixel zero padding is realised by masking lanes whose source pixel falls
    outside the image, so no padded copy is ever materialised.  Row ordering is
    (kh, kw)-major, channel-minor, matching
    w.transpose(0, 2, 3, 1).reshape(Cout, 9*Cin).
    """
    hw = H * W
    patches = []
    for kh in range(3):
        for kw in range(3):
            r, s = kh - 1, kw - 1
            if r == 0 and s == 0:
                patches.append(img)
                continue
            shift = (-(r * W + s)) % hw            # static, non-negative
            shifted = pltpu.roll(img, shift=shift, axis=1)
            conds = []
            if s > 0:
                conds.append(col < W - s)
            elif s < 0:
                conds.append(col >= -s)
            if r > 0:
                conds.append(row < H - r)
            elif r < 0:
                conds.append(row >= -r)
            ok = functools.reduce(jnp.logical_and, conds)   # (1, H*W) bool
            patches.append(jnp.where(ok, shifted, 0.0))
    return jnp.concatenate(patches, axis=0)        # (9*C, H*W)


# ---------------------------------------------------------------------------
# Kernels.
# ---------------------------------------------------------------------------
def _conv3x3_relu_kernel(col_ref, row_ref, x_ref, w_ref, b_ref, o_ref, *,
                         H, W, compute_dtype):
    # col_ref/row_ref: (1, H*W) int32 pixel coordinates of each flattened lane
    # x_ref: (1, Cin, H*W)   w_ref: (Cout, 9*Cin)   b_ref: (Cout, 1)
    # o_ref: (1, Cout, H*W)
    img = x_ref[0]                                             # (Cin, H*W)
    cols = _im2col_3x3(img, col_ref[...], row_ref[...], H, W)  # (9*Cin, H*W)
    acc = jnp.dot(w_ref[...].astype(compute_dtype),
                  cols.astype(compute_dtype),
                  preferred_element_type=jnp.float32)          # (Cout, H*W)
    acc = jnp.maximum(acc + b_ref[...].astype(jnp.float32), 0.0)
    o_ref[0] = acc.astype(o_ref.dtype)


def _fused_tail_kernel(col_ref, row_ref, x_ref, w2_ref, b2_ref, w3_ref, b3_ref,
                       enc_ref, o_ref, *, H, W, compute_dtype):
    # conv2 + ReLU + conv3 + ReLU + encoder skip-add, fully fused in VMEM.
    col = col_ref[...]
    row = row_ref[...]

    cols = _im2col_3x3(x_ref[0], col, row, H, W)               # (9*Cin, H*W)
    h = jnp.dot(w2_ref[...].astype(compute_dtype),
                cols.astype(compute_dtype),
                preferred_element_type=jnp.float32)            # (Cout, H*W)
    h = jnp.maximum(h + b2_ref[...].astype(jnp.float32), 0.0)

    cols = _im2col_3x3(h, col, row, H, W)                      # (9*Cout, H*W)
    out = jnp.dot(w3_ref[...].astype(compute_dtype),
                  cols.astype(compute_dtype),
                  preferred_element_type=jnp.float32)
    out = jnp.maximum(out + b3_ref[...].astype(jnp.float32), 0.0)
    out = out + enc_ref[0].astype(jnp.float32)                 # skip after ReLU
    o_ref[0] = out.astype(o_ref.dtype)


# ---------------------------------------------------------------------------
# Wrappers.
# ---------------------------------------------------------------------------
def _flat_pixel_index_maps(H, W):
    hw = H * W
    flat = jnp.arange(hw, dtype=jnp.int32)
    col = (flat % W).reshape(1, hw)
    row = (flat // W).reshape(1, hw)
    return col, row


def conv3x3_relu(x_nchw, w_oihw, b, *, compute_dtype=MXU_COMPUTE_DTYPE):
    """3x3 conv (stride 1, pad 1) + ReLU on NCHW input; one image per grid step."""
    N, Cin, H, W = x_nchw.shape
    Cout = w_oihw.shape[0]
    hw = H * W
    x_flat = x_nchw.reshape(N, Cin, hw)                            # free reshape
    w_mat = jnp.transpose(w_oihw, (0, 2, 3, 1)).reshape(Cout, 9 * Cin)
    b_mat = b.reshape(Cout, 1)
    col, row = _flat_pixel_index_maps(H, W)

    out = pl.pallas_call(
        functools.partial(_conv3x3_relu_kernel, H=H, W=W,
                          compute_dtype=compute_dtype),
        out_shape=jax.ShapeDtypeStruct((N, Cout, hw), x_nchw.dtype),
        grid=(N,),
        in_specs=[
            pl.BlockSpec((1, hw), lambda n: (0, 0)),            # col idx (resident)
            pl.BlockSpec((1, hw), lambda n: (0, 0)),            # row idx (resident)
            pl.BlockSpec((1, Cin, hw), lambda n: (n, 0, 0)),    # activations
            pl.BlockSpec((Cout, 9 * Cin), lambda n: (0, 0)),    # weights (resident)
            pl.BlockSpec((Cout, 1), lambda n: (0, 0)),          # bias (resident)
        ],
        out_specs=pl.BlockSpec((1, Cout, hw), lambda n: (n, 0, 0)),
        compiler_params=pltpu.CompilerParams(
            dimension_semantics=("parallel",),
            vmem_limit_bytes=32 * 1024 * 1024,
        ),
    )(col, row, x_flat, w_mat, b_mat)
    return out.reshape(N, Cout, H, W)


def conv_conv_skip(x_nchw, w2, b2, w3, b3, enc_nchw, *,
                   compute_dtype=MXU_COMPUTE_DTYPE):
    """Fused [3x3 conv + ReLU] -> [3x3 conv + ReLU] -> (+ encoder skip)."""
    N, Cin, H, W = x_nchw.shape
    Cout = w2.shape[0]
    hw = H * W
    x_flat = x_nchw.reshape(N, Cin, hw)
    enc_flat = enc_nchw.reshape(N, Cout, hw)
    w2_mat = jnp.transpose(w2, (0, 2, 3, 1)).reshape(Cout, 9 * Cin)
    w3_mat = jnp.transpose(w3, (0, 2, 3, 1)).reshape(Cout, 9 * Cout)
    b2_mat = b2.reshape(Cout, 1)
    b3_mat = b3.reshape(Cout, 1)
    col, row = _flat_pixel_index_maps(H, W)

    out = pl.pallas_call(
        functools.partial(_fused_tail_kernel, H=H, W=W,
                          compute_dtype=compute_dtype),
        out_shape=jax.ShapeDtypeStruct((N, Cout, hw), x_nchw.dtype),
        grid=(N,),
        in_specs=[
            pl.BlockSpec((1, hw), lambda n: (0, 0)),
            pl.BlockSpec((1, hw), lambda n: (0, 0)),
            pl.BlockSpec((1, Cin, hw), lambda n: (n, 0, 0)),
            pl.BlockSpec((Cout, 9 * Cin), lambda n: (0, 0)),
            pl.BlockSpec((Cout, 1), lambda n: (0, 0)),
            pl.BlockSpec((Cout, 9 * Cout), lambda n: (0, 0)),
            pl.BlockSpec((Cout, 1), lambda n: (0, 0)),
            pl.BlockSpec((1, Cout, hw), lambda n: (n, 0, 0)),
        ],
        out_specs=pl.BlockSpec((1, Cout, hw), lambda n: (n, 0, 0)),
        compiler_params=pltpu.CompilerParams(
            dimension_semantics=("parallel",),
            vmem_limit_bytes=32 * 1024 * 1024,
        ),
    )(col, row, x_flat, w2_mat, b2_mat, w3_mat, b3_mat, enc_flat)
    return out.reshape(N, Cout, H, W)


def pixel_shuffle_nchw(x, r=2):
    """NCHW PixelShuffle matching torch.nn.PixelShuffle channel ordering."""
    N, Crr, H, W = x.shape
    C = Crr // (r * r)
    x = x.reshape(N, C, r, r, H, W)               # channel index = c*r*r + i*r + j
    x = jnp.transpose(x, (0, 1, 4, 2, 5, 3))      # (N, C, H, i, W, j)
    return x.reshape(N, C, H * r, W * r)


def init_params(key, in_channels, out_channels):
    ks = jax.random.split(key, 6)
    c4 = 4 * in_channels
    return {
        "w1": 0.1 * jax.random.normal(ks[0], (c4, in_channels, 3, 3), jnp.float32),
        "b1": 0.1 * jax.random.normal(ks[1], (c4,), jnp.float32),
        "w2": 0.1 * jax.random.normal(ks[2], (out_channels, in_channels, 3, 3), jnp.float32),
        "b2": 0.1 * jax.random.normal(ks[3], (out_channels,), jnp.float32),
        "w3": 0.1 * jax.random.normal(ks[4], (out_channels, out_channels, 3, 3), jnp.float32),
        "b3": 0.1 * jax.random.normal(ks[5], (out_channels,), jnp.float32),
    }


@jax.jit
def unet_up_block_forward(x_nchw, encoder_output_nchw, params, mask=None):
    """UNetUpBlock.forward with attention_layer=None (mask unused)."""
    del mask  # attention_layer is None in this configuration; no attention applied.
    h = conv3x3_relu(x_nchw, params["w1"], params["b1"])      # (N, 4*Cin, H, W)
    h = pixel_shuffle_nchw(h, 2)                              # (N, Cin, 2H, 2W)
    return conv_conv_skip(h, params["w2"], params["b2"],      # (N, Cout, 2H, 2W)
                          params["w3"], params["b3"], encoder_output_nchw)


# ---------------------------------------------------------------------------
# Pure-XLA reference for a correctness check.
# ---------------------------------------------------------------------------
def _reference_forward(x, enc, params):
    def conv_relu(h, w, b):
        y = jax.lax.conv_general_dilated(
            h, w, window_strides=(1, 1), padding=((1, 1), (1, 1)),
            dimension_numbers=("NCHW", "OIHW", "NCHW"),
            precision=jax.lax.Precision.HIGHEST)
        return jax.nn.relu(y + b[None, :, None, None])

    h = conv_relu(x, params["w1"], params["b1"])
    h = pixel_shuffle_nchw(h, 2)
    h = conv_relu(h, params["w2"], params["b2"])
    h = conv_relu(h, params["w3"], params["b3"])
    return h + enc


if __name__ == "__main__":
    key = jax.random.PRNGKey(0)
    k_x, k_enc, k_p = jax.random.split(key, 3)

    # Small, TPU-friendly test shapes (channel counts kept >= 8 so the im2col
    # sublane concatenation stays 8-aligned).
    N, Cin, H, W = 2, 8, 16, 16
    Cout = 16

    x = jax.random.normal(k_x, (N, Cin, H, W), jnp.float32)
    encoder_output = jax.random.normal(k_enc, (N, Cout, 2 * H, 2 * W), jnp.float32)
    mask = None  # unused (attention_layer=None)
    params = init_params(k_p, Cin, Cout)

    out = unet_up_block_forward(x, encoder_output, params, mask)
    jax.block_until_ready(out)
    assert out.shape == (N, Cout, 2 * H, 2 * W), out.shape

    ref = _reference_forward(x, encoder_output, params)
    max_err = float(jnp.max(jnp.abs(out - ref)))
    assert max_err < 1e-1, f"max |err| = {max_err}"

    print("KERNEL_OK")
</pallas_src>

<mosaic_0001>
module attributes {stable_mosaic.version = 11 : i64} {
  func.func @_conv3x3_relu_kernel(%arg0: i32, %arg1: memref<1x256xi32, #tpu.memory_space<vmem>>, %arg2: memref<1x256xi32, #tpu.memory_space<vmem>>, %arg3: memref<1x8x256xf32, #tpu.memory_space<vmem>>, %arg4: memref<32x72xf32, #tpu.memory_space<vmem>>, %arg5: memref<32x1xf32, #tpu.memory_space<vmem>>, %arg6: memref<1x32x256xf32, #tpu.memory_space<vmem>>) attributes {dimension_semantics = [#tpu.dimension_semantics<parallel>], iteration_bounds = array<i64: 2>, scalar_prefetch = 0 : i64, scratch_operands = 0 : i64, tpu.core_type = #tpu.core_type<tc>, window_params = [{pipeline_mode = #tpu.pipeline_mode<synchronous>, transform_indices = @transform_0, window_bounds = array<i64: 1, 256>}, {pipeline_mode = #tpu.pipeline_mode<synchronous>, transform_indices = @transform_1, window_bounds = array<i64: 1, 256>}, {transform_indices = @transform_2, window_bounds = array<i64: 1, 8, 256>}, {pipeline_mode = #tpu.pipeline_mode<synchronous>, transform_indices = @transform_3, window_bounds = array<i64: 32, 72>}, {pipeline_mode = #tpu.pipeline_mode<synchronous>, transform_indices = @transform_4, window_bounds = array<i64: 32, 1>}, {transform_indices = @transform_5, window_bounds = array<i64: 1, 32, 256>}]} {
    %c0 = arith.constant 0 : index
    %c0_0 = arith.constant 0 : index
    %c0_1 = arith.constant 0 : index
    %0 = vector.load %arg3[%c0, %c0_0, %c0_1] : memref<1x8x256xf32, #tpu.memory_space<vmem>>, vector<1x8x256xf32>
    %1 = vector.shape_cast %0 : vector<1x8x256xf32> to vector<8x256xf32>
    %c0_2 = arith.constant 0 : index
    %c0_3 = arith.constant 0 : index
    %2 = vector.load %arg1[%c0_2, %c0_3] : memref<1x256xi32, #tpu.memory_space<vmem>>, vector<1x256xi32>
    %c0_4 = arith.constant 0 : index
    %c0_5 = arith.constant 0 : index
    %3 = vector.load %arg2[%c0_4, %c0_5] : memref<1x256xi32, #tpu.memory_space<vmem>>, vector<1x256xi32>
    %c17_i32 = arith.constant 17 : i32
    %4 = tpu.dynamic_rotate %1 by %c17_i32 dim 1 : vector<8x256xf32>, i32 -> vector<8x256xf32>
    %c1_i32 = arith.constant 1 : i32
    %5 = vector.broadcast %c1_i32 : i32 to vector<1x256xi32>
    %6 = arith.cmpi sge, %2, %5 : vector<1x256xi32>
    %c1_i32_6 = arith.constant 1 : i32
    %7 = vector.broadcast %c1_i32_6 : i32 to vector<1x256xi32>
    %8 = arith.cmpi sge, %3, %7 : vector<1x256xi32>
    %9 = arith.andi %6, %8 : vector<1x256xi1>
    %cst = arith.constant 0.000000e+00 : f32
    %10 = vector.shape_cast %9 : vector<1x256xi1> to vector<1x256xi1>
    %11 = vector.broadcast %10 : vector<1x256xi1> to vector<8x256xi1>
    %12 = vector.broadcast %cst : f32 to vector<8x256xf32>
    %13 = arith.select %11, %4, %12 : vector<8x256xi1>, vector<8x256xf32>
    %c16_i32 = arith.constant 16 : i32
    %14 = tpu.dynamic_rotate %1 by %c16_i32 dim 1 : vector<8x256xf32>, i32 -> vector<8x256xf32>
    %c1_i32_7 = arith.constant 1 : i32
    %15 = vector.broadcast %c1_i32_7 : i32 to vector<1x256xi32>
    %16 = arith.cmpi sge, %3, %15 : vector<1x256xi32>
    %cst_8 = arith.constant 0.000000e+00 : f32
    %17 = vector.shape_cast %16 : vector<1x256xi1> to vector<1x256xi1>
    %18 = vector.broadcast %17 : vector<1x256xi1> to vector<8x256xi1>
    %19 = vector.broadcast %cst_8 : f32 to vector<8x256xf32>
    %20 = arith.select %18, %14, %19 : vector<8x256xi1>, vector<8x256xf32>
    %c15_i32 = arith.constant 15 : i32
    %21 = tpu.dynamic_rotate %1 by %c15_i32 dim 1 : vector<8x256xf32>, i32 -> vector<8x256xf32>
    %c15_i32_9 = arith.constant 15 : i32
    %22 = vector.broadcast %c15_i32_9 : i32 to vector<1x256xi32>
    %23 = arith.cmpi slt, %2, %22 : vector<1x256xi32>
    %c1_i32_10 = arith.constant 1 : i32
    %24 = vector.broadcast %c1_i32_10 : i32 to vector<1x256xi32>
    %25 = arith.cmpi sge, %3, %24 : vector<1x256xi32>
    %26 = arith.andi %23, %25 : vector<1x256xi1>
    %cst_11 = arith.constant 0.000000e+00 : f32
    %27 = vector.shape_cast %26 : vector<1x256xi1> to vector<1x256xi1>
    %28 = vector.broadcast %27 : vector<1x256xi1> to vector<8x256xi1>
    %29 = vector.broadcast %cst_11 : f32 to vector<8x256xf32>
    %30 = arith.select %28, %21, %29 : vector<8x256xi1>, vector<8x256xf32>
    %c1_i32_12 = arith.constant 1 : i32
    %31 = tpu.dynamic_rotate %1 by %c1_i32_12 dim 1 : vector<8x256xf32>, i32 -> vector<8x256xf32>
    %c1_i32_13 = arith.constant 1 : i32
    %32 = vector.broadcast %c1_i32_13 : i32 to vector<1x256xi32>
    %33 = arith.cmpi sge, %2, %32 : vector<1x256xi32>
    %cst_14 = arith.constant 0.000000e+00 : f32
    %34 = vector.shape_cast %33 : vector<1x256xi1> to vector<1x256xi1>
    %35 = vector.broadcast %34 : vector<1x256xi1> to vector<8x256xi1>
    %36 = vector.broadcast %cst_14 : f32 to vector<8x256xf32>
    %37 = arith.select %35, %31, %36 : vector<8x256xi1>, vector<8x256xf32>
    %c255_i32 = arith.constant 255 : i32
    %38 = tpu.dynamic_rotate %1 by %c255_i32 dim 1 : vector<8x256xf32>, i32 -> vector<8x256xf32>
    %c15_i32_15 = arith.constant 15 : i32
    %39 = vector.broadcast %c15_i32_15 : i32 to vector<1x256xi32>
    %40 = arith.cmpi slt, %2, %39 : vector<1x256xi32>
    %cst_16 = arith.constant 0.000000e+00 : f32
    %41 = vector.shape_cast %40 : vector<1x256xi1> to vector<1x256xi1>
    %42 = vector.broadcast %41 : vector<1x256xi1> to vector<8x256xi1>
    %43 = vector.broadcast %cst_16 : f32 to vector<8x256xf32>
    %44 = arith.select %42, %38, %43 : vector<8x256xi1>, vector<8x256xf32>
    %c241_i32 = arith.constant 241 : i32
    %45 = tpu.dynamic_rotate %1 by %c241_i32 dim 1 : vector<8x256xf32>, i32 -> vector<8x256xf32>
    %c1_i32_17 = arith.constant 1 : i32
    %46 = vector.broadcast %c1_i32_17 : i32 to vector<1x256xi32>
    %47 = arith.cmpi sge, %2, %46 : vector<1x256xi32>
    %c15_i32_18 = arith.constant 15 : i32
    %48 = vector.broadcast %c15_i32_18 : i32 to vector<1x256xi32>
    %49 = arith.cmpi slt, %3, %48 : vector<1x256xi32>
    %50 = arith.andi %47, %49 : vector<1x256xi1>
    %cst_19 = arith.constant 0.000000e+00 : f32
    %51 = vector.shape_cast %50 : vector<1x256xi1> to vector<1x256xi1>
    %52 = vector.broadcast %51 : vector<1x256xi1> to vector<8x256xi1>
    %53 = vector.broadcast %cst_19 : f32 to vector<8x256xf32>
    %54 = arith.select %52, %45, %53 : vector<8x256xi1>, vector<8x256xf32>
    %c240_i32 = arith.constant 240 : i32
    %55 = tpu.dynamic_rotate %1 by %c240_i32 dim 1 : vector<8x256xf32>, i32 -> vector<8x256xf32>
    %c15_i32_20 = arith.constant 15 : i32
    %56 = vector.broadcast %c15_i32_20 : i32 to vector<1x256xi32>
    %57 = arith.cmpi slt, %3, %56 : vector<1x256xi32>
    %cst_21 = arith.constant 0.000000e+00 : f32
    %58 = vector.shape_cast %57 : vector<1x256xi1> to vector<1x256xi1>
    %59 = vector.broadcast %58 : vector<1x256xi1> to vector<8x256xi1>
    %60 = vector.broadcast %cst_21 : f32 to vector<8x256xf32>
    %61 = arith.select %59, %55, %60 : vector<8x256xi1>, vector<8x256xf32>
    %c239_i32 = arith.constant 239 : i32
    %62 = tpu.dynamic_rotate %1 by %c239_i32 dim 1 : vector<8x256xf32>, i32 -> vector<8x256xf32>
    %c15_i32_22 = arith.constant 15 : i32
    %63 = vector.broadcast %c15_i32_22 : i32 to vector<1x256xi32>
    %64 = arith.cmpi slt, %2, %63 : vector<1x256xi32>
    %c15_i32_23 = arith.constant 15 : i32
    %65 = vector.broadcast %c15_i32_23 : i32 to vector<1x256xi32>
    %66 = arith.cmpi slt, %3, %65 : vector<1x256xi32>
    %67 = arith.andi %64, %66 : vector<1x256xi1>
    %cst_24 = arith.constant 0.000000e+00 : f32
    %68 = vector.shape_cast %67 : vector<1x256xi1> to vector<1x256xi1>
    %69 = vector.broadcast %68 : vector<1x256xi1> to vector<8x256xi1>
    %70 = vector.broadcast %cst_24 : f32 to vector<8x256xf32>
    %71 = arith.select %69, %62, %70 : vector<8x256xi1>, vector<8x256xf32>
    %72 = tpu.concatenate %13, %20, %30, %37, %1, %44, %54, %61, %71 in 0 : vector<8x256xf32>, vector<8x256xf32>, vector<8x256xf32>, vector<8x256xf32>, vector<8x256xf32>, vector<8x256xf32>, vector<8x256xf32>, vector<8x256xf32>, vector<8x256xf32> -> vector<72x256xf32>
    %c0_25 = arith.constant 0 : index
    %c0_26 = arith.constant 0 : index
    %73 = vector.load %arg4[%c0_25, %c0_26] : memref<32x72xf32, #tpu.memory_space<vmem>>, vector<32x72xf32>
    %cst_27 = arith.constant dense<0.000000e+00> : vector<32x256xf32>
    %74 = tpu.matmul %73, %72, %cst_27 {dimension_numbers = #tpu.dot_dimension_numbers<[1], [0], [0], [1], [0, 0, 1, 1], [], []>} : vector<32x72xf32>, vector<72x256xf32>, vector<32x256xf32> -> vector<32x256xf32>
    %c0_28 = arith.constant 0 : index
    %c0_29 = arith.constant 0 : index
    %75 = vector.load %arg5[%c0_28, %c0_29] : memref<32x1xf32, #tpu.memory_space<vmem>>, vector<32x1xf32>
    %76 = vector.broadcast %75 : vector<32x1xf32> to vector<32x256xf32>
    %77 = arith.addf %74, %76 : vector<32x256xf32>
    %cst_30 = arith.constant 0.000000e+00 : f32
    %78 = vector.broadcast %cst_30 : f32 to vector<32x256xf32>
    %79 = arith.maximumf %77, %78 : vector<32x256xf32>
    %c0_31 = arith.constant 0 : index
    %c0_32 = arith.constant 0 : index
    %c0_33 = arith.constant 0 : index
    %80 = vector.load %arg6[%c0_31, %c0_32, %c0_33] : memref<1x32x256xf32, #tpu.memory_space<vmem>>, vector<1x32x256xf32>
    %81 = vector.shape_cast %80 : vector<1x32x256xf32> to vector<32x256xf32>
    %82 = vector.shape_cast %79 : vector<32x256xf32> to vector<1x32x256xf32>
    tpu.vector_store %arg6[%c0_31, %c0_32, %c0_33], %82 {strides = array<i32>} : memref<1x32x256xf32, #tpu.memory_space<vmem>>, vector<1x32x256xf32>,
    return
  }
  func.func @transform_0(%arg0: i32) -> (i32, i32) {
    %c0_i32 = arith.constant 0 : i32
    %c0_i32_0 = arith.constant 0 : i32
    %c0_i32_1 = arith.constant 0 : i32
    return %c0_i32, %c0_i32_0 : i32, i32
  }
  func.func @transform_1(%arg0: i32) -> (i32, i32) {
    %c0_i32 = arith.constant 0 : i32
    %c0_i32_0 = arith.constant 0 : i32
    %c0_i32_1 = arith.constant 0 : i32
    return %c0_i32, %c0_i32_0 : i32, i32
  }
  func.func @transform_2(%arg0: i32) -> (i32, i32, i32) {
    %c0_i32 = arith.constant 0 : i32
    %c0_i32_0 = arith.constant 0 : i32
    %c0_i32_1 = arith.constant 0 : i32
    return %arg0, %c0_i32, %c0_i32_0 : i32, i32, i32
  }
  func.func @transform_3(%arg0: i32) -> (i32, i32) {
    %c0_i32 = arith.constant 0 : i32
    %c0_i32_0 = arith.constant 0 : i32
    %c0_i32_1 = arith.constant 0 : i32
    return %c0_i32, %c0_i32_0 : i32, i32
  }
  func.func @transform_4(%arg0: i32) -> (i32, i32) {
    %c0_i32 = arith.constant 0 : i32
    %c0_i32_0 = arith.constant 0 : i32
    %c0_i32_1 = arith.constant 0 : i32
    return %c0_i32, %c0_i32_0 : i32, i32
  }
  func.func @transform_5(%arg0: i32) -> (i32, i32, i32) {
    %c0_i32 = arith.constant 0 : i32
    %c0_i32_0 = arith.constant 0 : i32
    %c0_i32_1 = arith.constant 0 : i32
    return %arg0, %c0_i32, %c0_i32_0 : i32, i32, i32
  }
}

module attributes {stable_mosaic.version = 11 : i64} {
  func.func @_fused_tail_kernel(%arg0: i32, %arg1: memref<1x1024xi32, #tpu.memory_space<vmem>>, %arg2: memref<1x1024xi32, #tpu.memory_space<vmem>>, %arg3: memref<1x8x1024xf32, #tpu.memory_space<vmem>>, %arg4: memref<16x72xf32, #tpu.memory_space<vmem>>, %arg5: memref<16x1xf32, #tpu.memory_space<vmem>>, %arg6: memref<16x144xf32, #tpu.memory_space<vmem>>, %arg7: memref<16x1xf32, #tpu.memory_space<vmem>>, %arg8: memref<1x16x1024xf32, #tpu.memory_space<vmem>>, %arg9: memref<1x16x1024xf32, #tpu.memory_space<vmem>>) attributes {dimension_semantics = [#tpu.dimension_semantics<parallel>], iteration_bounds = array<i64: 2>, scalar_prefetch = 0 : i64, scratch_operands = 0 : i64, tpu.core_type = #tpu.core_type<tc>, window_params = [{pipeline_mode = #tpu.pipeline_mode<synchronous>, transform_indices = @transform_0, window_bounds = array<i64: 1, 1024>}, {pipeline_mode = #tpu.pipeline_mode<synchronous>, transform_indices = @transform_1, window_bounds = array<i64: 1, 1024>}, {transform_indices = @transform_2, window_bounds = array<i64: 1, 8, 1024>}, {pipeline_mode = #tpu.pipeline_mode<synchronous>, transform_indices = @transform_3, window_bounds = array<i64: 16, 72>}, {pipeline_mode = #tpu.pipeline_mode<synchronous>, transform_indices = @transform_4, window_bounds = array<i64: 16, 1>}, {pipeline_mode = #tpu.pipeline_mode<synchronous>, transform_indices = @transform_5, window_bounds = array<i64: 16, 144>}, {pipeline_mode = #tpu.pipeline_mode<synchronous>, transform_indices = @transform_6, window_bounds = array<i64: 16, 1>}, {transform_indices = @transform_7, window_bounds = array<i64: 1, 16, 1024>}, {transform_indices = @transform_8, window_bounds = array<i64: 1, 16, 1024>}]} {
    %c0 = arith.constant 0 : index
    %c0_0 = arith.constant 0 : index
    %0 = vector.load %arg1[%c0, %c0_0] : memref<1x1024xi32, #tpu.memory_space<vmem>>, vector<1x1024xi32>
    %c0_1 = arith.constant 0 : index
    %c0_2 = arith.constant 0 : index
    %1 = vector.load %arg2[%c0_1, %c0_2] : memref<1x1024xi32, #tpu.memory_space<vmem>>, vector<1x1024xi32>
    %c0_3 = arith.constant 0 : index
    %c0_4 = arith.constant 0 : index
    %c0_5 = arith.constant 0 : index
    %2 = vector.load %arg3[%c0_3, %c0_4, %c0_5] : memref<1x8x1024xf32, #tpu.memory_space<vmem>>, vector<1x8x1024xf32>
    %3 = vector.shape_cast %2 : vector<1x8x1024xf32> to vector<8x1024xf32>
    %c33_i32 = arith.constant 33 : i32
    %4 = tpu.dynamic_rotate %3 by %c33_i32 dim 1 : vector<8x1024xf32>, i32 -> vector<8x1024xf32>
    %c1_i32 = arith.constant 1 : i32
    %5 = vector.broadcast %c1_i32 : i32 to vector<1x1024xi32>
    %6 = arith.cmpi sge, %0, %5 : vector<1x1024xi32>
    %c1_i32_6 = arith.constant 1 : i32
    %7 = vector.broadcast %c1_i32_6 : i32 to vector<1x1024xi32>
    %8 = arith.cmpi sge, %1, %7 : vector<1x1024xi32>
    %9 = arith.andi %6, %8 : vector<1x1024xi1>
    %cst = arith.constant 0.000000e+00 : f32
    %10 = vector.shape_cast %9 : vector<1x1024xi1> to vector<1x1024xi1>
    %11 = vector.broadcast %10 : vector<1x1024xi1> to vector<8x1024xi1>
    %12 = vector.broadcast %cst : f32 to vector<8x1024xf32>
    %13 = arith.select %11, %4, %12 : vector<8x1024xi1>, vector<8x1024xf32>
    %c32_i32 = arith.constant 32 : i32
    %14 = tpu.dynamic_rotate %3 by %c32_i32 dim 1 : vector<8x1024xf32>, i32 -> vector<8x1024xf32>
    %c1_i32_7 = arith.constant 1 : i32
    %15 = vector.broadcast %c1_i32_7 : i32 to vector<1x1024xi32>
    %16 = arith.cmpi sge, %1, %15 : vector<1x1024xi32>
    %cst_8 = arith.constant 0.000000e+00 : f32
    %17 = vector.shape_cast %16 : vector<1x1024xi1> to vector<1x1024xi1>
    %18 = vector.broadcast %17 : vector<1x1024xi1> to vector<8x1024xi1>
    %19 = vector.broadcast %cst_8 : f32 to vector<8x1024xf32>
    %20 = arith.select %18, %14, %19 : vector<8x1024xi1>, vector<8x1024xf32>
    %c31_i32 = arith.constant 31 : i32
    %21 = tpu.dynamic_rotate %3 by %c31_i32 dim 1 : vector<8x1024xf32>, i32 -> vector<8x1024xf32>
    %c31_i32_9 = arith.constant 31 : i32
    %22 = vector.broadcast %c31_i32_9 : i32 to vector<1x1024xi32>
    %23 = arith.cmpi slt, %0, %22 : vector<1x1024xi32>
    %c1_i32_10 = arith.constant 1 : i32
    %24 = vector.broadcast %c1_i32_10 : i32 to vector<1x1024xi32>
    %25 = arith.cmpi sge, %1, %24 : vector<1x1024xi32>
    %26 = arith.andi %23, %25 : vector<1x1024xi1>
    %cst_11 = arith.constant 0.000000e+00 : f32
    %27 = vector.shape_cast %26 : vector<1x1024xi1> to vector<1x1024xi1>
    %28 = vector.broadcast %27 : vector<1x1024xi1> to vector<8x1024xi1>
    %29 = vector.broadcast %cst_11 : f32 to vector<8x1024xf32>
    %30 = arith.select %28, %21, %29 : vector<8x1024xi1>, vector<8x1024xf32>
    %c1_i32_12 = arith.constant 1 : i32
    %31 = tpu.dynamic_rotate %3 by %c1_i32_12 dim 1 : vector<8x1024xf32>, i32 -> vector<8x1024xf32>
    %c1_i32_13 = arith.constant 1 : i32
    %32 = vector.broadcast %c1_i32_13 : i32 to vector<1x1024xi32>
    %33 = arith.cmpi sge, %0, %32 : vector<1x1024xi32>
    %cst_14 = arith.constant 0.000000e+00 : f32
    %34 = vector.shape_cast %33 : vector<1x1024xi1> to vector<1x1024xi1>
    %35 = vector.broadcast %34 : vector<1x1024xi1> to vector<8x1024xi1>
    %36 = vector.broadcast %cst_14 : f32 to vector<8x1024xf32>
    %37 = arith.select %35, %31, %36 : vector<8x1024xi1>, vector<8x1024xf32>
    %c1023_i32 = arith.constant 1023 : i32
    %38 = tpu.dynamic_rotate %3 by %c1023_i32 dim 1 : vector<8x1024xf32>, i32 -> vector<8x1024xf32>
    %c31_i32_15 = arith.constant 31 : i32
    %39 = vector.broadcast %c31_i32_15 : i32 to vector<1x1024xi32>
    %40 = arith.cmpi slt, %0, %39 : vector<1x1024xi32>
    %cst_16 = arith.constant 0.000000e+00 : f32
    %41 = vector.shape_cast %40 : vector<1x1024xi1> to vector<1x1024xi1>
    %42 = vector.broadcast %41 : vector<1x1024xi1> to vector<8x1024xi1>
    %43 = vector.broadcast %cst_16 : f32 to vector<8x1024xf32>
    %44 = arith.select %42, %38, %43 : vector<8x1024xi1>, vector<8x1024xf32>
    %c993_i32 = arith.constant 993 : i32
    %45 = tpu.dynamic_rotate %3 by %c993_i32 dim 1 : vector<8x1024xf32>, i32 -> vector<8x1024xf32>
    %c1_i32_17 = arith.constant 1 : i32
    %46 = vector.broadcast %c1_i32_17 : i32 to vector<1x1024xi32>
    %47 = arith.cmpi sge, %0, %46 : vector<1x1024xi32>
    %c31_i32_18 = arith.constant 31 : i32
    %48 = vector.broadcast %c31_i32_18 : i32 to vector<1x1024xi32>
    %49 = arith.cmpi slt, %1, %48 : vector<1x1024xi32>
    %50 = arith.andi %47, %49 : vector<1x1024xi1>
    %cst_19 = arith.constant 0.000000e+00 : f32
    %51 = vector.shape_cast %50 : vector<1x1024xi1> to vector<1x1024xi1>
    %52 = vector.broadcast %51 : vector<1x1024xi1> to vector<8x1024xi1>
    %53 = vector.broadcast %cst_19 : f32 to vector<8x1024xf32>
    %54 = arith.select %52, %45, %53 : vector<8x1024xi1>, vector<8x1024xf32>
    %c992_i32 = arith.constant 992 : i32
    %55 = tpu.dynamic_rotate %3 by %c992_i32 dim 1 : vector<8x1024xf32>, i32 -> vector<8x1024xf32>
    %c31_i32_20 = arith.constant 31 : i32
    %56 = vector.broadcast %c31_i32_20 : i32 to vector<1x1024xi32>
    %57 = arith.cmpi slt, %1, %56 : vector<1x1024xi32>
    %cst_21 = arith.constant 0.000000e+00 : f32
    %58 = vector.shape_cast %57 : vector<1x1024xi1> to vector<1x1024xi1>
    %59 = vector.broadcast %58 : vector<1x1024xi1> to vector<8x1024xi1>
    %60 = vector.broadcast %cst_21 : f32 to vector<8x1024xf32>
    %61 = arith.select %59, %55, %60 : vector<8x1024xi1>, vector<8x1024xf32>
    %c991_i32 = arith.constant 991 : i32
    %62 = tpu.dynamic_rotate %3 by %c991_i32 dim 1 : vector<8x1024xf32>, i32 -> vector<8x1024xf32>
    %c31_i32_22 = arith.constant 31 : i32
    %63 = vector.broadcast %c31_i32_22 : i32 to vector<1x1024xi32>
    %64 = arith.cmpi slt, %0, %63 : vector<1x1024xi32>
    %c31_i32_23 = arith.constant 31 : i32
    %65 = vector.broadcast %c31_i32_23 : i32 to vector<1x1024xi32>
    %66 = arith.cmpi slt, %1, %65 : vector<1x1024xi32>
    %67 = arith.andi %64, %66 : vector<1x1024xi1>
    %cst_24 = arith.constant 0.000000e+00 : f32
    %68 = vector.shape_cast %67 : vector<1x1024xi1> to vector<1x1024xi1>
    %69 = vector.broadcast %68 : vector<1x1024xi1> to vector<8x1024xi1>
    %70 = vector.broadcast %cst_24 : f32 to vector<8x1024xf32>
    %71 = arith.select %69, %62, %70 : vector<8x1024xi1>, vector<8x1024xf32>
    %72 = tpu.concatenate %13, %20, %30, %37, %3, %44, %54, %61, %71 in 0 : vector<8x1024xf32>, vector<8x1024xf32>, vector<8x1024xf32>, vector<8x1024xf32>, vector<8x1024xf32>, vector<8x1024xf32>, vector<8x1024xf32>, vector<8x1024xf32>, vector<8x1024xf32> -> vector<72x1024xf32>
    %c0_25 = arith.constant 0 : index
    %c0_26 = arith.constant 0 : index
    %73 = vector.load %arg4[%c0_25, %c0_26] : memref<16x72xf32, #tpu.memory_space<vmem>>, vector<16x72xf32>
    %cst_27 = arith.constant dense<0.000000e+00> : vector<16x1024xf32>
    %74 = tpu.matmul %73, %72, %cst_27 {dimension_numbers = #tpu.dot_dimension_numbers<[1], [0], [0], [1], [0, 0, 1, 1], [], []>} : vector<16x72xf32>, vector<72x1024xf32>, vector<16x1024xf32> -> vector<16x1024xf32>
    %c0_28 = arith.constant 0 : index
    %c0_29 = arith.constant 0 : index
    %75 = vector.load %arg5[%c0_28, %c0_29] : memref<16x1xf32, #tpu.memory_space<vmem>>, vector<16x1xf32>
    %76 = vector.broadcast %75 : vector<16x1xf32> to vector<16x1024xf32>
    %77 = arith.addf %74, %76 : vector<16x1024xf32>
    %cst_30 = arith.constant 0.000000e+00 : f32
    %78 = vector.broadcast %cst_30 : f32 to vector<16x1024xf32>
    %79 = arith.maximumf %77, %78 : vector<16x1024xf32>
    %c33_i32_31 = arith.constant 33 : i32
    %80 = tpu.dynamic_rotate %79 by %c33_i32_31 dim 1 : vector<16x1024xf32>, i32 -> vector<16x1024xf32>
    %c1_i32_32 = arith.constant 1 : i32
    %81 = vector.broadcast %c1_i32_32 : i32 to vector<1x1024xi32>
    %82 = arith.cmpi sge, %0, %81 : vector<1x1024xi32>
    %c1_i32_33 = arith.constant 1 : i32
    %83 = vector.broadcast %c1_i32_33 : i32 to vector<1x1024xi32>
    %84 = arith.cmpi sge, %1, %83 : vector<1x1024xi32>
    %85 = arith.andi %82, %84 : vector<1x1024xi1>
    %cst_34 = arith.constant 0.000000e+00 : f32
    %86 = vector.shape_cast %85 : vector<1x1024xi1> to vector<1x1024xi1>
    %87 = vector.broadcast %86 : vector<1x1024xi1> to vector<16x1024xi1>
    %88 = vector.broadcast %cst_34 : f32 to vector<16x1024xf32>
    %89 = arith.select %87, %80, %88 : vector<16x1024xi1>, vector<16x1024xf32>
    %c32_i32_35 = arith.constant 32 : i32
    %90 = tpu.dynamic_rotate %79 by %c32_i32_35 dim 1 : vector<16x1024xf32>, i32 -> vector<16x1024xf32>
    %c1_i32_36 = arith.constant 1 : i32
    %91 = vector.broadcast %c1_i32_36 : i32 to vector<1x1024xi32>
    %92 = arith.cmpi sge, %1, %91 : vector<1x1024xi32>
    %cst_37 = arith.constant 0.000000e+00 : f32
    %93 = vector.shape_cast %92 : vector<1x1024xi1> to vector<1x1024xi1>
    %94 = vector.broadcast %93 : vector<1x1024xi1> to vector<16x1024xi1>
    %95 = vector.broadcast %cst_37 : f32 to vector<16x1024xf32>
    %96 = arith.select %94, %90, %95 : vector<16x1024xi1>, vector<16x1024xf32>
    %c31_i32_38 = arith.constant 31 : i32
    %97 = tpu.dynamic_rotate %79 by %c31_i32_38 dim 1 : vector<16x1024xf32>, i32 -> vector<16x1024xf32>
    %c31_i32_39 = arith.constant 31 : i32
    %98 = vector.broadcast %c31_i32_39 : i32 to vector<1x1024xi32>
    %99 = arith.cmpi slt, %0, %98 : vector<1x1024xi32>
    %c1_i32_40 = arith.constant 1 : i32
    %100 = vector.broadcast %c1_i32_40 : i32 to vector<1x1024xi32>
    %101 = arith.cmpi sge, %1, %100 : vector<1x1024xi32>
    %102 = arith.andi %99, %101 : vector<1x1024xi1>
    %cst_41 = arith.constant 0.000000e+00 : f32
    %103 = vector.shape_cast %102 : vector<1x1024xi1> to vector<1x1024xi1>
    %104 = vector.broadcast %103 : vector<1x1024xi1> to vector<16x1024xi1>
    %105 = vector.broadcast %cst_41 : f32 to vector<16x1024xf32>
    %106 = arith.select %104, %97, %105 : vector<16x1024xi1>, vector<16x1024xf32>
    %c1_i32_42 = arith.constant 1 : i32
    %107 = tpu.dynamic_rotate %79 by %c1_i32_42 dim 1 : vector<16x1024xf32>, i32 -> vector<16x1024xf32>
    %c1_i32_43 = arith.constant 1 : i32
    %108 = vector.broadcast %c1_i32_43 : i32 to vector<1x1024xi32>
    %109 = arith.cmpi sge, %0, %108 : vector<1x1024xi32>
    %cst_44 = arith.constant 0.000000e+00 : f32
    %110 = vector.shape_cast %109 : vector<1x1024xi1> to vector<1x1024xi1>
    %111 = vector.broadcast %110 : vector<1x1024xi1> to vector<16x1024xi1>
    %112 = vector.broadcast %cst_44 : f32 to vector<16x1024xf32>
    %113 = arith.select %111, %107, %112 : vector<16x1024xi1>, vector<16x1024xf32>
    %c1023_i32_45 = arith.constant 1023 : i32
    %114 = tpu.dynamic_rotate %79 by %c1023_i32_45 dim 1 : vector<16x1024xf32>, i32 -> vector<16x1024xf32>
    %c31_i32_46 = arith.constant 31 : i32
    %115 = vector.broadcast %c31_i32_46 : i32 to vector<1x1024xi32>
    %116 = arith.cmpi slt, %0, %115 : vector<1x1024xi32>
    %cst_47 = arith.constant 0.000000e+00 : f32
    %117 = vector.shape_cast %116 : vector<1x1024xi1> to vector<1x1024xi1>
    %118 = vector.broadcast %117 : vector<1x1024xi1> to vector<16x1024xi1>
    %119 = vector.broadcast %cst_47 : f32 to vector<16x1024xf32>
    %120 = arith.select %118, %114, %119 : vector<16x1024xi1>, vector<16x1024xf32>
    %c993_i32_48 = arith.constant 993 : i32
    %121 = tpu.dynamic_rotate %79 by %c993_i32_48 dim 1 : vector<16x1024xf32>, i32 -> vector<16x1024xf32>
    %c1_i32_49 = arith.constant 1 : i32
    %122 = vector.broadcast %c1_i32_49 : i32 to vector<1x1024xi32>
    %123 = arith.cmpi sge, %0, %122 : vector<1x1024xi32>
    %c31_i32_50 = arith.constant 31 : i32
    %124 = vector.broadcast %c31_i32_50 : i32 to vector<1x1024xi32>
    %125 = arith.cmpi slt, %1, %124 : vector<1x1024xi32>
    %126 = arith.andi %123, %125 : vector<1x1024xi1>
    %cst_51 = arith.constant 0.000000e+00 : f32
    %127 = vector.shape_cast %126 : vector<1x1024xi1> to vector<1x1024xi1>
    %128 = vector.broadcast %127 : vector<1x1024xi1> to vector<16x1024xi1>
    %129 = vector.broadcast %cst_51 : f32 to vector<16x1024xf32>
    %130 = arith.select %128, %121, %129 : vector<16x1024xi1>, vector<16x1024xf32>
    %c992_i32_52 = arith.constant 992 : i32
    %131 = tpu.dynamic_rotate %79 by %c992_i32_52 dim 1 : vector<16x1024xf32>, i32 -> vector<16x1024xf32>
    %c31_i32_53 = arith.constant 31 : i32
    %132 = vector.broadcast %c31_i32_53 : i32 to vector<1x1024xi32>
    %133 = arith.cmpi slt, %1, %132 : vector<1x1024xi32>
    %cst_54 = arith.constant 0.000000e+00 : f32
    %134 = vector.shape_cast %133 : vector<1x1024xi1> to vector<1x1024xi1>
    %135 = vector.broadcast %134 : vector<1x1024xi1> to vector<16x1024xi1>
    %136 = vector.broadcast %cst_54 : f32 to vector<16x1024xf32>
    %137 = arith.select %135, %131, %136 : vector<16x1024xi1>, vector<16x1024xf32>
    %c991_i32_55 = arith.constant 991 : i32
    %138 = tpu.dynamic_rotate %79 by %c991_i32_55 dim 1 : vector<16x1024xf32>, i32 -> vector<16x1024xf32>
    %c31_i32_56 = arith.constant 31 : i32
    %139 = vector.broadcast %c31_i32_56 : i32 to vector<1x1024xi32>
    %140 = arith.cmpi slt, %0, %139 : vector<1x1024xi32>
    %c31_i32_57 = arith.constant 31 : i32
    %141 = vector.broadcast %c31_i32_57 : i32 to vector<1x1024xi32>
    %142 = arith.cmpi slt, %1, %141 : vector<1x1024xi32>
    %143 = arith.andi %140, %142 : vector<1x1024xi1>
    %cst_58 = arith.constant 0.000000e+00 : f32
    %144 = vector.shape_cast %143 : vector<1x1024xi1> to vector<1x1024xi1>
    %145 = vector.broadcast %144 : vector<1x1024xi1> to vector<16x1024xi1>
    %146 = vector.broadcast %cst_58 : f32 to vector<16x1024xf32>
    %147 = arith.select %145, %138, %146 : vector<16x1024xi1>, vector<16x1024xf32>
    %148 = tpu.concatenate %89, %96, %106, %113, %79, %120, %130, %137, %147 in 0 : vector<16x1024xf32>, vector<16x1024xf32>, vector<16x1024xf32>, vector<16x1024xf32>, vector<16x1024xf32>, vector<16x1024xf32>, vector<16x1024xf32>, vector<16x1024xf32>, vector<16x1024xf32> -> vector<144x1024xf32>
    %c0_59 = arith.constant 0 : index
    %c0_60 = arith.constant 0 : index
    %149 = vector.load %arg6[%c0_59, %c0_60] : memref<16x144xf32, #tpu.memory_space<vmem>>, vector<16x144xf32>
    %cst_61 = arith.constant dense<0.000000e+00> : vector<16x1024xf32>
    %150 = tpu.matmul %149, %148, %cst_61 {dimension_numbers = #tpu.dot_dimension_numbers<[1], [0], [0], [1], [0, 0, 1, 1], [], []>} : vector<16x144xf32>, vector<144x1024xf32>, vector<16x1024xf32> -> vector<16x1024xf32>
    %c0_62 = arith.constant 0 : index
    %c0_63 = arith.constant 0 : index
    %151 = vector.load %arg7[%c0_62, %c0_63] : memref<16x1xf32, #tpu.memory_space<vmem>>, vector<16x1xf32>
    %152 = vector.broadcast %151 : vector<16x1xf32> to vector<16x1024xf32>
    %153 = arith.addf %150, %152 : vector<16x1024xf32>
    %cst_64 = arith.constant 0.000000e+00 : f32
    %154 = vector.broadcast %cst_64 : f32 to vector<16x1024xf32>
    %155 = arith.maximumf %153, %154 : vector<16x1024xf32>
    %c0_65 = arith.constant 0 : index
    %c0_66 = arith.constant 0 : index
    %c0_67 = arith.constant 0 : index
    %156 = vector.load %arg8[%c0_65, %c0_66, %c0_67] : memref<1x16x1024xf32, #tpu.memory_space<vmem>>, vector<1x16x1024xf32>
    %157 = vector.shape_cast %156 : vector<1x16x1024xf32> to vector<16x1024xf32>
    %158 = arith.addf %155, %157 : vector<16x1024xf32>
    %c0_68 = arith.constant 0 : index
    %c0_69 = arith.constant 0 : index
    %c0_70 = arith.constant 0 : index
    %159 = vector.load %arg9[%c0_68, %c0_69, %c0_70] : memref<1x16x1024xf32, #tpu.memory_space<vmem>>, vector<1x16x1024xf32>
    %160 = vector.shape_cast %159 : vector<1x16x1024xf32> to vector<16x1024xf32>
    %161 = vector.shape_cast %158 : vector<16x1024xf32> to vector<1x16x1024xf32>
    tpu.vector_store %arg9[%c0_68, %c0_69, %c0_70], %161 {strides = array<i32>} : memref<1x16x1024xf32, #tpu.memory_space<vmem>>, vector<1x16x1024xf32>,
    return
  }
  func.func @transform_0(%arg0: i32) -> (i32, i32) {
    %c0_i32 = arith.constant 0 : i32
    %c0_i32_0 = arith.constant 0 : i32
    %c0_i32_1 = arith.constant 0 : i32
    return %c0_i32, %c0_i32_0 : i32, i32
  }
  func.func @transform_1(%arg0: i32) -> (i32, i32) {
    %c0_i32 = arith.constant 0 : i32
    %c0_i32_0 = arith.constant 0 : i32
    %c0_i32_1 = arith.constant 0 : i32
    return %c0_i32, %c0_i32_0 : i32, i32
  }
  func.func @transform_2(%arg0: i32) -> (i32, i32, i32) {
    %c0_i32 = arith.constant 0 : i32
    %c0_i32_0 = arith.constant 0 : i32
    %c0_i32_1 = arith.constant 0 : i32
    return %arg0, %c0_i32, %c0_i32_0 : i32, i32, i32
  }
  func.func @transform_3(%arg0: i32) -> (i32, i32) {
    %c0_i32 = arith.constant 0 : i32
    %c0_i32_0 = arith.constant 0 : i32
    %c0_i32_1 = arith.constant 0 : i32
    return %c0_i32, %c0_i32_0 : i32, i32
  }
  func.func @transform_4(%arg0: i32) -> (i32, i32) {
    %c0_i32 = arith.constant 0 : i32
    %c0_i32_0 = arith.constant 0 : i32
    %c0_i32_1 = arith.constant 0 : i32
    return %c0_i32, %c0_i32_0 : i32, i32
  }
  func.func @transform_5(%arg0: i32) -> (i32, i32) {
    %c0_i32 = arith.constant 0 : i32
    %c0_i32_0 = arith.constant 0 : i32
    %c0_i32_1 = arith.constant 0 : i32
    return %c0_i32, %c0_i32_0 : i32, i32
  }
  func.func @transform_6(%arg0: i32) -> (i32, i32) {
    %c0_i32 = arith.constant 0 : i32
    %c0_i32_0 = arith.constant 0 : i32
    %c0_i32_1 = arith.constant 0 : i32
    return %c0_i32, %c0_i32_0 : i32, i32
  }
  func.func @transform_7(%arg0: i32) -> (i32, i32, i32) {
    %c0_i32 = arith.constant 0 : i32
    %c0_i32_0 = arith.constant 0 : i32
    %c0_i32_1 = arith.constant 0 : i32
    return %arg0, %c0_i32, %c0_i32_0 : i32, i32, i32
  }
  func.func @transform_8(%arg0: i32) -> (i32, i32, i32) {
    %c0_i32 = arith.constant 0 : i32
    %c0_i32_0 = arith.constant 0 : i32
    %c0_i32_1 = arith.constant 0 : i32
    return %arg0, %c0_i32, %c0_i32_0 : i32, i32, i32
  }
}

</mosaic_0001>

<llo_original>
// kernel: unet_up_block_forward.2
$region0: #{unet_up_block_forward.2}
  #allocation0 [shape = 'u32[]', space=smem, size = 0x4, offset = 0x4, fixed_abs, tag = 'smem constant byte address 0x4 - core index']
  #allocation1 [shape = 'u32[72,128]{1,0:T(1,128)}', space=vmem, size = 0x9000, scoped, tag = 'internal scratch']
  %s0 = inlined_call_operand.vmem [shape: s32[1,256], index: 0, kind: input, shape index: {}]
  %s1 = inlined_call_operand.vmem [shape: s32[1,256], index: 1, kind: input, shape index: {}]
  %s2 = inlined_call_operand.vmem [shape: f32[2,8,256], index: 2, kind: input, shape index: {}]
  %s3 = inlined_call_operand.vmem [shape: f32[32,72], index: 3, kind: input, shape index: {}]
  %s4 = inlined_call_operand.vmem [shape: f32[32,1], index: 4, kind: input, shape index: {}]
  %s5 = inlined_call_operand.vmem [shape: f32[2,32,256], index: 5, kind: output, shape index: {}]
  %s6 = sld [smem:[#allocation0]]
  $region53: #{unet_up_block_forward.2} parent=0
    _
  %s8 = ssub.s32 1, %s6
  %s9 = scalar_select 0, %s8, %s6
  loop: start=0, step=1, limit=4
  $region2: #{unet_up_block_forward.2} parent=0 // loop_pre_header
    _
  $region3: #{unet_up_block_forward.2} parent=0 // loop_header
    %s11 = sphi 0, %s15
    %p12 = scmp.ge.s32.totalorder %s11, 4
    %s19 = sphi 0, %s19
    %s21 = sphi 0, %s19
    %s22 = sphi 0, %s21
    %s36 = sphi 0, %s22
    %s40 = sphi 0, %s40
    %s42 = sphi 0, %s40
    %s43 = sphi 0, %s42
    %s57 = sphi 0, %s43
    %s63 = sphi 0, %s65
    %s66 = sphi 0, %s63
    %s67 = sphi 0, %s66
    %s83 = sphi 0, %s67
    %s87 = sphi 0, %s87
    %s89 = sphi 0, %s87
    %s90 = sphi 0, %s89
    %s104 = sphi 0, %s90
    %s108 = sphi 0, %s108
    %s110 = sphi 0, %s108
    %s111 = sphi 0, %s110
    %s125 = sphi 0, %s111
    %s131 = sphi 0, %s133
    %s134 = sphi 0, %s131
    %s135 = sphi 0, %s134
    %s151 = sphi 0, %s135
  $region4: #{unet_up_block_forward.2} parent=0 // loop_header_branch
    %14 = sbr.rel (%p12) target = $region8
  $region5: #{unet_up_block_forward.2} parent=0 // loop_body
    %s16 = ssub.s32 %s11, 1
    %s17 = ssub.s32 %s11, 2
    %s18 = sadd.s32 %s11, 1
    %s20 = sadd.s32 %s19, 1
    %p23 = scmp.eq.s32.totalorder %s11, 1
    %p24 = scmp.ne.s32.totalorder %s19, %s21
    %p25 = scmp.eq.s32.totalorder %s11, 0
    %p26 = por %p24, %p25
    %p27 = scmp.ne.s32.totalorder %s19, %s21
    %p28 = scmp.eq.s32.totalorder %s16, 1
    %p29 = por %p27, %p28
    %p30 = scmp.ne.s32.totalorder %s21, %s22
    %p31 = scmp.eq.s32.totalorder %s16, 0
    %p32 = por %p30, %p31
    %p33 = scmp.ne.s32.totalorder %s21, %s22
    %p34 = scmp.eq.s32.totalorder %s17, 1
    %p35 = por %p33, %p34
    %p37 = scmp.ne.s32.totalorder %s22, %s36
    %p38 = scmp.eq.s32.totalorder %s17, 0
    %p39 = por %p37, %p38
    %s41 = sadd.s32 %s40, 1
    %p44 = scmp.eq.s32.totalorder %s11, 1
    %p45 = scmp.ne.s32.totalorder %s40, %s42
    %p46 = scmp.eq.s32.totalorder %s11, 0
    %p47 = por %p45, %p46
    %p48 = scmp.ne.s32.totalorder %s40, %s42
    %p49 = scmp.eq.s32.totalorder %s16, 1
    %p50 = por %p48, %p49
    %p51 = scmp.ne.s32.totalorder %s42, %s43
    %p52 = scmp.eq.s32.totalorder %s16, 0
    %p53 = por %p51, %p52
    %p54 = scmp.ne.s32.totalorder %s42, %s43
    %p55 = scmp.eq.s32.totalorder %s17, 1
    %p56 = por %p54, %p55
    %p58 = scmp.ne.s32.totalorder %s43, %s57
    %p59 = scmp.eq.s32.totalorder %s17, 0
    %p60 = por %p58, %p59
    %s61 = ssub.s32 %s11, %s18
    %p62 = scmp.eq.s32.totalorder %s61, 0
    %s64 = sadd.s32 %s63, 1
    %s65 = scalar_select %p62, %s63, %s64
    %p68 = pneg %p62
    %p69 = scmp.eq.s32.totalorder %s11, 1
    %p70 = por %p68, %p69
    %p71 = scmp.ne.s32.totalorder %s63, %s66
    %p72 = scmp.eq.s32.totalorder %s11, 0
    %p73 = por %p71, %p72
    %p74 = scmp.ne.s32.totalorder %s63, %s66
    %p75 = scmp.eq.s32.totalorder %s16, 1
    %p76 = por %p74, %p75
    %p77 = scmp.ne.s32.totalorder %s66, %s67
    %p78 = scmp.eq.s32.totalorder %s16, 0
    %p79 = por %p77, %p78
    %p80 = scmp.ne.s32.totalorder %s66, %s67
    %p81 = scmp.eq.s32.totalorder %s17, 1
    %p82 = por %p80, %p81
    %p84 = scmp.ne.s32.totalorder %s67, %s83
    %p85 = scmp.eq.s32.totalorder %s17, 0
    %p86 = por %p84, %p85
    %s88 = sadd.s32 %s87, 1
    %p91 = scmp.eq.s32.totalorder %s11, 1
    %p92 = scmp.ne.s32.totalorder %s87, %s89
    %p93 = scmp.eq.s32.totalorder %s11, 0
    %p94 = por %p92, %p93
    %p95 = scmp.ne.s32.totalorder %s87, %s89
    %p96 = scmp.eq.s32.totalorder %s16, 1
    %p97 = por %p95, %p96
    %p98 = scmp.ne.s32.totalorder %s89, %s90
    %p99 = scmp.eq.s32.totalorder %s16, 0
    %p100 = por %p98, %p99
    %p101 = scmp.ne.s32.totalorder %s89, %s90
    %p102 = scmp.eq.s32.totalorder %s17, 1
    %p103 = por %p101, %p102
    %p105 = scmp.ne.s32.totalorder %s90, %s104
    %p106 = scmp.eq.s32.totalorder %s17, 0
    %p107 = por %p105, %p106
    %s109 = sadd.s32 %s108, 1
    %p112 = scmp.eq.s32.totalorder %s11, 1
    %p113 = scmp.ne.s32.totalorder %s108, %s110
    %p114 = scmp.eq.s32.totalorder %s11, 0
    %p115 = por %p113, %p114
    %p116 = scmp.ne.s32.totalorder %s108, %s110
    %p117 = scmp.eq.s32.totalorder %s16, 1
    %p118 = por %p116, %p117
    %p119 = scmp.ne.s32.totalorder %s110, %s111
    %p120 = scmp.eq.s32.totalorder %s16, 0
    %p121 = por %p119, %p120
    %p122 = scmp.ne.s32.totalorder %s110, %s111
    %p123 = scmp.eq.s32.totalorder %s17, 1
    %p124 = por %p122, %p123
    %p126 = scmp.ne.s32.totalorder %s111, %s125
    %p127 = scmp.eq.s32.totalorder %s17, 0
    %p128 = por %p126, %p127
    %s129 = ssub.s32 %s11, %s18
    %p130 = scmp.eq.s32.totalorder %s129, 0
    %s132 = sadd.s32 %s131, 1
    %s133 = scalar_select %p130, %s131, %s132
    %p136 = pneg %p130
    %p137 = scmp.eq.s32.totalorder %s11, 1
    %p138 = por %p136, %p137
    %p139 = scmp.ne.s32.totalorder %s131, %s134
    %p140 = scmp.eq.s32.totalorder %s11, 0
    %p141 = por %p139, %p140
    %p142 = scmp.ne.s32.totalorder %s131, %s134
    %p143 = scmp.eq.s32.totalorder %s16, 1
    %p144 = por %p142, %p143
    %p145 = scmp.ne.s32.totalorder %s134, %s135
    %p146 = scmp.eq.s32.totalorder %s16, 0
    %p147 = por %p145, %p146
    %p148 = scmp.ne.s32.totalorder %s134, %s135
    %p149 = scmp.eq.s32.totalorder %s17, 1
    %p150 = por %p148, %p149
    %p152 = scmp.ne.s32.totalorder %s135, %s151
    %p153 = scmp.eq.s32.totalorder %s17, 0
    %p154 = por %p152, %p153
    %p155 = scmp.le.s32.totalorder 1, %s11
    %p156 = scmp.lt.s32.totalorder %s11, 3
    %p157 = pnand %p155, %p156
    %p158 = pneg %p157
    // Predicated region
    $region9: #{unet_up_block_forward.2} parent=5 // pred_check
      _
    $region10: #{unet_up_block_forward.2} parent=5 // pred_check_branch
      %160 = sbr.rel (%p157) target = $region12
    $region11: #{unet_up_block_forward.2} parent=5 // pred_region
      %s161 = ssub.s32 %s11, 1
      // Predicated region
      $region13: #{unet_up_block_forward.2} parent=11 // pred_check
        %p162 = pneg %p32
      $region14: #{unet_up_block_forward.2} parent=11 // pred_check_branch
        %164 = sbr.rel (%p162) target = $region16
      $region15: #{unet_up_block_forward.2} parent=11 // pred_region
        _
      $region16: #{unet_up_block_forward.2} parent=11 // pred_fallthru
        _
      // Predicated region
      $region17: #{unet_up_block_forward.2} parent=11 // pred_check
        %p165 = pneg %p53
      $region18: #{unet_up_block_forward.2} parent=11 // pred_check_branch
        %167 = sbr.rel (%p165) target = $region20
      $region19: #{unet_up_block_forward.2} parent=11 // pred_region
        _
      $region20: #{unet_up_block_forward.2} parent=11 // pred_fallthru
        _
      // Predicated region
      $region21: #{unet_up_block_forward.2} parent=11 // pred_check
        %p168 = pneg %p100
      $region22: #{unet_up_block_forward.2} parent=11 // pred_check_branch
        %170 = sbr.rel (%p168) target = $region24
      $region23: #{unet_up_block_forward.2} parent=11 // pred_region
        _
      $region24: #{unet_up_block_forward.2} parent=11 // pred_fallthru
        _
      // Predicated region
      $region25: #{unet_up_block_forward.2} parent=11 // pred_check
        %p171 = pneg %p121
      $region26: #{unet_up_block_forward.2} parent=11 // pred_check_branch
        %173 = sbr.rel (%p171) target = $region28
      $region27: #{unet_up_block_forward.2} parent=11 // pred_region
        _
      $region28: #{unet_up_block_forward.2} parent=11 // pred_fallthru
        _
    $region12: #{unet_up_block_forward.2} parent=5 // pred_fallthru
      _
    %p174 = scmp.lt.s32.totalorder %s11, 2
    // Predicated region
    $region29: #{unet_up_block_forward.2} parent=5 // pred_check
      %p175 = pneg %p174
    $region30: #{unet_up_block_forward.2} parent=5 // pred_check_branch
      %177 = sbr.rel (%p175) target = $region32
    $region31: #{unet_up_block_forward.2} parent=5 // pred_region
      // Predicated region
      $region33: #{unet_up_block_forward.2} parent=31 // pred_check
        %p178 = pneg %p73
      $region34: #{unet_up_block_forward.2} parent=31 // pred_check_branch
        %180 = sbr.rel (%p178) target = $region36
      $region35: #{unet_up_block_forward.2} parent=31 // pred_region
        %p181 = scmp.lt.s32.totalorder %s11, 1
        %s182 = scalar_select %p181, %s11, 1
        %s183 = smul.addr %s182, 2
        %s184 = smul.addr %s183, 8
        %s185 = scalar_lea.vmem %s2, %s184
      $region36: #{unet_up_block_forward.2} parent=31 // pred_fallthru
        _
    $region32: #{unet_up_block_forward.2} parent=5 // pred_fallthru
      _
    %p186 = scmp.le.s32.totalorder 1, %s11
    %p187 = scmp.lt.s32.totalorder %s11, 3
    %p188 = pnand %p186, %p187
    %p189 = pneg %p188
    // Predicated region
    $region37: #{unet_up_block_forward.2} parent=5 // pred_check
      _
    $region38: #{unet_up_block_forward.2} parent=5 // pred_check_branch
      %191 = sbr.rel (%p188) target = $region40
    $region39: #{unet_up_block_forward.2} parent=5 // pred_region
      %s192 = ssub.s32 %s11, 1
      %p193 = pneg %p32
      %p194 = pneg %p29
      %p195 = pneg %p53
      %p196 = pneg %p50
      %p197 = scmp.lt.s32.totalorder %s16, 1
      %s198 = scalar_select %p197, %s16, 1
      %s199 = smul.addr %s198, 2
      %s200 = smul.addr %s199, 8
      %s201 = scalar_lea.vmem %s2, %s200
      %p202 = pneg %p79
      %p203 = pneg %p76
      %p204 = pneg %p100
      %p205 = pneg %p97
      %p206 = pneg %p121
      %p207 = pneg %p118
      %p208 = pneg %p147
      %p209 = pneg %p144
      %p210 = scmp.lt.s32.totalorder %s16, 1
      %s211 = scalar_select %p210, %s16, 1
      %s212 = smul.addr %s211, 8
      %s213 = smul.addr %s212, 8
      %s214 = scalar_lea.vmem %s5, %s213
      %p215 = scmp.lt.s32.totalorder %s16, 1
      %s216 = scalar_select %p215, %s16, 1
      %s217 = smul.addr %s216, 2
      %s218 = smul.addr %s217, 8
      %s219 = scalar_lea.vmem %s2, %s218
      %p220 = scmp.lt.s32.totalorder %s16, 1
      %s221 = scalar_select %p220, %s16, 1
      %s222 = smul.addr %s221, 8
      %s223 = smul.addr %s222, 8
      %s224 = scalar_lea.vmem %s5, %s223
      %v225 = vld [vmem:[%s219] sm:$0xff]
      %v226 = vld [vmem:[%s219 + $0x8] sm:$0xff]
      %v227 = vld [vmem:[%s0] sm:$0x3]
      %v228 = vld [vmem:[%s1] sm:$0x3]
      %229 = vrot.lane.b32.xlu0 %v225, 17
      %v230 = vpop.permute.xlu0 %229
      %231 = vrot.lane.b32.xlu0 %v226, 17
      %v232 = vpop.permute.xlu0 %231
      %v233 = vlaneseq
      %v234 = vand.u32 %v233, 127
      %vm235 = vcmp.lt.s32.totalorder %v234, 17
      %v236 = vsel %vm235, %v230, %v232
      %v237 = vsel %vm235, %v232, %v230
      %vm238 = vcmp.ge.s32.totalorder %v227, 1
      %vm239 = vcmp.ge.s32.totalorder %v228, 1
      %vm240 = vmand %vm238, %vm239
      %v241 = vsel %vm240, 1, 0
      %v242 = vperm.slane %v241, 0
      %v243 = vperm.slane %v241, 1
      %vm244 = vcmp.eq.s32.totalorder %v242, 1
      %vm245 = vcmp.eq.s32.totalorder %v243, 1
      %v246 = vsel %vm244, %v237, 0.0
      %v247 = vsel %vm245, %v236, 0.0
      %248 = vrot.lane.b32.xlu0 %v225, 16
      %v249 = vpop.permute.xlu0 %248
      %250 = vrot.lane.b32.xlu0 %v226, 16
      %v251 = vpop.permute.xlu0 %250
      %vm252 = vcmp.lt.s32.totalorder %v234, 16
      %v253 = vsel %vm252, %v249, %v251
      %v254 = vsel %vm252, %v251, %v249
      %v255 = vsel %vm239, 1, 0
      %v256 = vperm.slane %v255, 0
      %v257 = vperm.slane %v255, 1
      %vm258 = vcmp.eq.s32.totalorder %v256, 1
      %vm259 = vcmp.eq.s32.totalorder %v257, 1
      %v260 = vsel %vm258, %v254, 0.0
      %v261 = vsel %vm259, %v253, 0.0
      %262 = vrot.lane.b32.xlu0 %v225, 15
      %v263 = vpop.permute.xlu0 %262
      %264 = vrot.lane.b32.xlu0 %v226, 15
      %v265 = vpop.permute.xlu0 %264
      %vm266 = vcmp.lt.s32.totalorder %v234, 15
      %v267 = vsel %vm266, %v263, %v265
      %v268 = vsel %vm266, %v265, %v263
      %vm269 = vcmp.lt.s32.totalorder %v227, 15
      %vm270 = vmand %vm269, %vm239
      %v271 = vsel %vm270, 1, 0
      %v272 = vperm.slane %v271, 0
      %v273 = vperm.slane %v271, 1
      %vm274 = vcmp.eq.s32.totalorder %v272, 1
      %vm275 = vcmp.eq.s32.totalorder %v273, 1
      %v276 = vsel %vm274, %v268, 0.0
      %v277 = vsel %vm275, %v267, 0.0
      %278 = vrot.lane.b32.xlu0 %v225, 1
      %v279 = vpop.permute.xlu0 %278
      %280 = vrot.lane.b32.xlu0 %v226, 1
      %v281 = vpop.permute.xlu0 %280
      %vm282 = vcmp.lt.s32.totalorder %v234, 1
      %v283 = vsel %vm282, %v279, %v281
      %v284 = vsel %vm282, %v281, %v279
      %v285 = vsel %vm238, 1, 0
      %v286 = vperm.slane %v285, 0
      %v287 = vperm.slane %v285, 1
      %vm288 = vcmp.eq.s32.totalorder %v286, 1
      %vm289 = vcmp.eq.s32.totalorder %v287, 1
      %v290 = vsel %vm288, %v284, 0.0
      %v291 = vsel %vm289, %v283, 0.0
      %292 = vrot.lane.b32.xlu0 %v225, 127
      %v293 = vpop.permute.xlu0 %292
      %294 = vrot.lane.b32.xlu0 %v226, 127
      %v295 = vpop.permute.xlu0 %294
      %vm296 = vcmp.lt.s32.totalorder %v234, 127
      %v297 = vsel %vm296, %v293, %v295
      %v298 = vsel %vm296, %v295, %v293
      %v299 = vsel %vm269, 1, 0
      %v300 = vperm.slane %v299, 0
      %v301 = vperm.slane %v299, 1
      %vm302 = vcmp.eq.s32.totalorder %v300, 1
      %vm303 = vcmp.eq.s32.totalorder %v301, 1
      %v304 = vsel %vm302, %v297, 0.0
      %v305 = vsel %vm303, %v298, 0.0
      %306 = vrot.lane.b32.xlu0 %v225, 113
      %v307 = vpop.permute.xlu0 %306
      %308 = vrot.lane.b32.xlu0 %v226, 113
      %v309 = vpop.permute.xlu0 %308
      %vm310 = vcmp.lt.s32.totalorder %v234, 113
      %v311 = vsel %vm310, %v307, %v309
      %v312 = vsel %vm310, %v309, %v307
      %vm313 = vcmp.lt.s32.totalorder %v228, 15
      %vm314 = vmand %vm238, %vm313
      %v315 = vsel %vm314, 1, 0
      %v316 = vperm.slane %v315, 0
      %v317 = vperm.slane %v315, 1
      %vm318 = vcmp.eq.s32.totalorder %v316, 1
      %vm319 = vcmp.eq.s32.totalorder %v317, 1
      %v320 = vsel %vm318, %v311, 0.0
      %v321 = vsel %vm319, %v312, 0.0
      %322 = vrot.lane.b32.xlu0 %v225, 112
      %v323 = vpop.permute.xlu0 %322
      %324 = vrot.lane.b32.xlu0 %v226, 112
      %v325 = vpop.permute.xlu0 %324
      %vm326 = vcmp.lt.s32.totalorder %v234, 112
      %v327 = vsel %vm326, %v323, %v325
      %v328 = vsel %vm326, %v325, %v323
      %v329 = vsel %vm313, 1, 0
      %v330 = vperm.slane %v329, 0
      %v331 = vperm.slane %v329, 1
      %vm332 = vcmp.eq.s32.totalorder %v330, 1
      %vm333 = vcmp.eq.s32.totalorder %v331, 1
      %v334 = vsel %vm332, %v327, 0.0
      %v335 = vsel %vm333, %v328, 0.0
      %336 = vrot.lane.b32.xlu0 %v225, 111
      %v337 = vpop.permute.xlu0 %336
      %338 = vrot.lane.b32.xlu0 %v226, 111
      %v339 = vpop.permute.xlu0 %338
      %vm340 = vcmp.lt.s32.totalorder %v234, 111
      %v341 = vsel %vm340, %v337, %v339
      %v342 = vsel %vm340, %v339, %v337
      %vm343 = vmand %vm269, %vm313
      %v344 = vsel %vm343, 1, 0
      %v345 = vperm.slane %v344, 0
      %v346 = vperm.slane %v344, 1
      %vm347 = vcmp.eq.s32.totalorder %v345, 1
      %vm348 = vcmp.eq.s32.totalorder %v346, 1
      %v349 = vsel %vm347, %v341, 0.0
      %v350 = vsel %vm348, %v342, 0.0
      %v351 = vld [vmem:[%s3] sm:$0xff]
      %v352 = vld [vmem:[%s3 + $0x8] sm:$0xff]
      %v353 = vld [vmem:[%s3 + $0x10] sm:$0xff]
      %v354 = vld [vmem:[%s3 + $0x18] sm:$0xff]
      %v355 = vld [vmem:[%s4] sm:$0xff]
      %v356 = vld [vmem:[%s4 + $0x8] sm:$0xff]
      %v357 = vld [vmem:[%s4 + $0x10] sm:$0xff]
      %v358 = vld [vmem:[%s4 + $0x18] sm:$0xff]
      %360 = vset.pattern.permute.xlu0 0
      %361 = vperm.xlu0 %360, %v355
      %v362 = vpop.permute.xlu0 %361
      %365 = vset.pattern.permute.xlu0 0
      %366 = vperm.xlu0 %365, %v356
      %v367 = vpop.permute.xlu0 %366
      %370 = vset.pattern.permute.xlu0 0
      %371 = vperm.xlu0 %370, %v357
      %v372 = vpop.permute.xlu0 %371
      %375 = vset.pattern.permute.xlu0 0
      %376 = vperm.xlu0 %375, %v358
      %v377 = vpop.permute.xlu0 %376
      %vm379 = vcmask 588800
      %v381 = vsel %vm379, %v351, 0
      %v384 = vsel %vm379, %v352, 0
      %v387 = vsel %vm379, %v353, 0
      %v390 = vsel %vm379, %v354, 0
      %392 = vmatpush.msra.mxu0 0.0
      %393 = vmatpush.msra.mxu0 0.0
      %394 = vmatpush.msra.mxu0 0.0
      %395 = vmatpush.msra.mxu0 0.0
      %396 = vmatpush.msra.mxu0 0.0
      %397 = vmatpush.msra.mxu0 0.0
      %398 = vmatpush.msra.mxu0 0.0
      %399 = vmatpush.msra.mxu0 %v349
      %400 = vmatpush.msra.mxu0 %v334
      %401 = vmatpush.msra.mxu0 %v320
      %402 = vmatpush.msra.mxu0 %v304
      %403 = vmatpush.msra.mxu0 %v225
      %404 = vmatpush.msra.mxu0 %v290
      %405 = vmatpush.msra.mxu0 %v276
      %406 = vmatpush.msra.mxu0 %v260
      %407 = vmatpush.msra.mxu0 %v246
      %408 = vmatmul.f32.gmra.mxu0 %v381
      %v409 = vpop.f32.mrf.mxu0
      %v410 = vadd.f32 %v362, %v409
      %411 = vmatmul.f32.gmra.mxu0 %v384
      %v412 = vpop.f32.mrf.mxu0
      %v413 = vadd.f32 %v367, %v412
      %414 = vmatmul.f32.gmra.mxu0 %v387
      %v415 = vpop.f32.mrf.mxu0
      %v416 = vadd.f32 %v372, %v415
      %417 = vmatmul.f32.gmra.mxu0 %v390
      %v418 = vpop.f32.mrf.mxu0
      %v419 = vadd.f32 %v377, %v418
      %420 = vdwg.mxu0
      %421 = vmatpush.msra.mxu0 0.0
      %422 = vmatpush.msra.mxu0 0.0
      %423 = vmatpush.msra.mxu0 0.0
      %424 = vmatpush.msra.mxu0 0.0
      %425 = vmatpush.msra.mxu0 0.0
      %426 = vmatpush.msra.mxu0 0.0
      %427 = vmatpush.msra.mxu0 0.0
      %428 = vmatpush.msra.mxu0 %v350
      %429 = vmatpush.msra.mxu0 %v335
      %430 = vmatpush.msra.mxu0 %v321
      %431 = vmatpush.msra.mxu0 %v305
      %432 = vmatpush.msra.mxu0 %v226
      %433 = vmatpush.msra.mxu0 %v291
      %434 = vmatpush.msra.mxu0 %v277
      %435 = vmatpush.msra.mxu0 %v261
      %436 = vmatpush.msra.mxu0 %v247
      %437 = vmatmul.f32.gmra.mxu0 %v381
      %v438 = vpop.f32.mrf.mxu0
      %v439 = vadd.f32 %v362, %v438
      %440 = vmatmul.f32.gmra.mxu0 %v384
      %v441 = vpop.f32.mrf.mxu0
      %v442 = vadd.f32 %v367, %v441
      %443 = vmatmul.f32.gmra.mxu0 %v387
      %v444 = vpop.f32.mrf.mxu0
      %v445 = vadd.f32 %v372, %v444
      %446 = vmatmul.f32.gmra.mxu0 %v390
      %v447 = vpop.f32.mrf.mxu0
      %v448 = vadd.f32 %v377, %v447
      %449 = vdwg.mxu0
      %v450 = vmax.f32 %v410, 0.0
      %v451 = vmax.f32 %v439, 0.0
      %v452 = vmax.f32 %v413, 0.0
      %v453 = vmax.f32 %v442, 0.0
      %v454 = vmax.f32 %v416, 0.0
      %v455 = vmax.f32 %v445, 0.0
      %v456 = vmax.f32 %v419, 0.0
      %v457 = vmax.f32 %v448, 0.0
      %458 = vst [vmem:[%s224] sm:$0xff] %v450
      %459 = vst [vmem:[%s224 + $0x8] sm:$0xff] %v451
      %460 = vst [vmem:[%s224 + $0x10] sm:$0xff] %v452
      %461 = vst [vmem:[%s224 + $0x18] sm:$0xff] %v453
      %462 = vst [vmem:[%s224 + $0x20] sm:$0xff] %v454
      %463 = vst [vmem:[%s224 + $0x28] sm:$0xff] %v455
      %464 = vst [vmem:[%s224 + $0x30] sm:$0xff] %v456
      %465 = vst [vmem:[%s224 + $0x38] sm:$0xff] %v457
      %p466 = scmp.lt.s32.totalorder %s16, 1
      %s467 = scalar_select %p466, %s16, 1
      %s468 = smul.addr %s467, 8
      %s469 = smul.addr %s468, 8
      %s470 = scalar_lea.vmem %s5, %s469
      // Predicated region
      $region41: #{unet_up_block_forward.2} parent=39 // pred_check
        %p471 = pneg %p144
      $region42: #{unet_up_block_forward.2} parent=39 // pred_check_branch
        %473 = sbr.rel (%p471) target = $region44
      $region43: #{unet_up_block_forward.2} parent=39 // pred_region
        _
      $region44: #{unet_up_block_forward.2} parent=39 // pred_fallthru
        _
    $region40: #{unet_up_block_forward.2} parent=5 // pred_fallthru
      _
    %p474 = scmp.le.s32.totalorder 2, %s11
    // Predicated region
    $region45: #{unet_up_block_forward.2} parent=5 // pred_check
      %p475 = pneg %p474
    $region46: #{unet_up_block_forward.2} parent=5 // pred_check_branch
      %477 = sbr.rel (%p475) target = $region48
    $region47: #{unet_up_block_forward.2} parent=5 // pred_region
      %s478 = ssub.s32 %s11, 2
      // Predicated region
      $region49: #{unet_up_block_forward.2} parent=47 // pred_check
        %p479 = pneg %p150
      $region50: #{unet_up_block_forward.2} parent=47 // pred_check_branch
        %481 = sbr.rel (%p479) target = $region52
      $region51: #{unet_up_block_forward.2} parent=47 // pred_region
        %p482 = scmp.lt.s32.totalorder %s17, 1
        %s483 = scalar_select %p482, %s17, 1
        %s484 = smul.addr %s483, 8
        %s485 = smul.addr %s484, 8
        %s486 = scalar_lea.vmem %s5, %s485
      $region52: #{unet_up_block_forward.2} parent=47 // pred_fallthru
        _
    $region48: #{unet_up_block_forward.2} parent=5 // pred_fallthru
      _
  $region6: #{unet_up_block_forward.2} parent=0 // loop_footer
    %s15 = sadd.s32 1, %s11
  $region7: #{unet_up_block_forward.2} parent=0 // loop_footer_branch
    %10 = sbr.rel target = $region3
  $region8: #{unet_up_block_forward.2} parent=0 // loop_exit
    _

// kernel: unet_up_block_forward.3
$region0: #{unet_up_block_forward.3}
  #allocation0 [shape = 'u32[]', space=smem, size = 0x4, offset = 0x4, fixed_abs, tag = 'smem constant byte address 0x4 - core index']
  #allocation1 [shape = 'u32[72,128]{1,0:T(1,128)}', space=vmem, size = 0x9000, scoped, tag = 'internal scratch']
  %s0 = inlined_call_operand.vmem [shape: s32[1,1024], index: 0, kind: input, shape index: {}]
  %s1 = inlined_call_operand.vmem [shape: s32[1,1024], index: 1, kind: input, shape index: {}]
  %s2 = inlined_call_operand.vmem [shape: f32[2,8,1024], index: 2, kind: input, shape index: {}]
  %s3 = inlined_call_operand.vmem [shape: f32[16,72], index: 3, kind: input, shape index: {}]
  %s4 = inlined_call_operand.vmem [shape: f32[16,1], index: 4, kind: input, shape index: {}]
  %s5 = inlined_call_operand.vmem [shape: f32[16,144], index: 5, kind: input, shape index: {}]
  %s6 = inlined_call_operand.vmem [shape: f32[16,1], index: 6, kind: input, shape index: {}]
  %s7 = inlined_call_operand.vmem [shape: f32[2,16,1024], index: 7, kind: input, shape index: {}]
  %s8 = inlined_call_operand.vmem [shape: f32[2,16,1024], index: 8, kind: output, shape index: {}]
  %s9 = sld [smem:[#allocation0]]
  $region65: #{unet_up_block_forward.3} parent=0
    _
  %s11 = ssub.s32 1, %s9
  %s12 = scalar_select 0, %s11, %s9
  loop: start=0, step=1, limit=4
  $region2: #{unet_up_block_forward.3} parent=0 // loop_pre_header
    _
  $region3: #{unet_up_block_forward.3} parent=0 // loop_header
    %s14 = sphi 0, %s18
    %p15 = scmp.ge.s32.totalorder %s14, 4
    %s22 = sphi 0, %s22
    %s24 = sphi 0, %s22
    %s25 = sphi 0, %s24
    %s39 = sphi 0, %s25
    %s43 = sphi 0, %s43
    %s45 = sphi 0, %s43
    %s46 = sphi 0, %s45
    %s60 = sphi 0, %s46
    %s66 = sphi 0, %s68
    %s69 = sphi 0, %s66
    %s70 = sphi 0, %s69
    %s86 = sphi 0, %s70
    %s90 = sphi 0, %s90
    %s92 = sphi 0, %s90
    %s93 = sphi 0, %s92
    %s107 = sphi 0, %s93
    %s111 = sphi 0, %s111
    %s113 = sphi 0, %s111
    %s114 = sphi 0, %s113
    %s128 = sphi 0, %s114
    %s132 = sphi 0, %s132
    %s134 = sphi 0, %s132
    %s135 = sphi 0, %s134
    %s149 = sphi 0, %s135
    %s153 = sphi 0, %s153
    %s155 = sphi 0, %s153
    %s156 = sphi 0, %s155
    %s170 = sphi 0, %s156
    %s176 = sphi 0, %s178
    %s179 = sphi 0, %s176
    %s180 = sphi 0, %s179
    %s196 = sphi 0, %s180
    %s202 = sphi 0, %s204
    %s205 = sphi 0, %s202
    %s206 = sphi 0, %s205
    %s222 = sphi 0, %s206
  $region4: #{unet_up_block_forward.3} parent=0 // loop_header_branch
    %17 = sbr.rel (%p15) target = $region8
  $region5: #{unet_up_block_forward.3} parent=0 // loop_body
    %s19 = ssub.s32 %s14, 1
    %s20 = ssub.s32 %s14, 2
    %s21 = sadd.s32 %s14, 1
    %s23 = sadd.s32 %s22, 1
    %p26 = scmp.eq.s32.totalorder %s14, 1
    %p27 = scmp.ne.s32.totalorder %s22, %s24
    %p28 = scmp.eq.s32.totalorder %s14, 0
    %p29 = por %p27, %p28
    %p30 = scmp.ne.s32.totalorder %s22, %s24
    %p31 = scmp.eq.s32.totalorder %s19, 1
    %p32 = por %p30, %p31
    %p33 = scmp.ne.s32.totalorder %s24, %s25
    %p34 = scmp.eq.s32.totalorder %s19, 0
    %p35 = por %p33, %p34
    %p36 = scmp.ne.s32.totalorder %s24, %s25
    %p37 = scmp.eq.s32.totalorder %s20, 1
    %p38 = por %p36, %p37
    %p40 = scmp.ne.s32.totalorder %s25, %s39
    %p41 = scmp.eq.s32.totalorder %s20, 0
    %p42 = por %p40, %p41
    %s44 = sadd.s32 %s43, 1
    %p47 = scmp.eq.s32.totalorder %s14, 1
    %p48 = scmp.ne.s32.totalorder %s43, %s45
    %p49 = scmp.eq.s32.totalorder %s14, 0
    %p50 = por %p48, %p49
    %p51 = scmp.ne.s32.totalorder %s43, %s45
    %p52 = scmp.eq.s32.totalorder %s19, 1
    %p53 = por %p51, %p52
    %p54 = scmp.ne.s32.totalorder %s45, %s46
    %p55 = scmp.eq.s32.totalorder %s19, 0
    %p56 = por %p54, %p55
    %p57 = scmp.ne.s32.totalorder %s45, %s46
    %p58 = scmp.eq.s32.totalorder %s20, 1
    %p59 = por %p57, %p58
    %p61 = scmp.ne.s32.totalorder %s46, %s60
    %p62 = scmp.eq.s32.totalorder %s20, 0
    %p63 = por %p61, %p62
    %s64 = ssub.s32 %s14, %s21
    %p65 = scmp.eq.s32.totalorder %s64, 0
    %s67 = sadd.s32 %s66, 1
    %s68 = scalar_select %p65, %s66, %s67
    %p71 = pneg %p65
    %p72 = scmp.eq.s32.totalorder %s14, 1
    %p73 = por %p71, %p72
    %p74 = scmp.ne.s32.totalorder %s66, %s69
    %p75 = scmp.eq.s32.totalorder %s14, 0
    %p76 = por %p74, %p75
    %p77 = scmp.ne.s32.totalorder %s66, %s69
    %p78 = scmp.eq.s32.totalorder %s19, 1
    %p79 = por %p77, %p78
    %p80 = scmp.ne.s32.totalorder %s69, %s70
    %p81 = scmp.eq.s32.totalorder %s19, 0
    %p82 = por %p80, %p81
    %p83 = scmp.ne.s32.totalorder %s69, %s70
    %p84 = scmp.eq.s32.totalorder %s20, 1
    %p85 = por %p83, %p84
    %p87 = scmp.ne.s32.totalorder %s70, %s86
    %p88 = scmp.eq.s32.totalorder %s20, 0
    %p89 = por %p87, %p88
    %s91 = sadd.s32 %s90, 1
    %p94 = scmp.eq.s32.totalorder %s14, 1
    %p95 = scmp.ne.s32.totalorder %s90, %s92
    %p96 = scmp.eq.s32.totalorder %s14, 0
    %p97 = por %p95, %p96
    %p98 = scmp.ne.s32.totalorder %s90, %s92
    %p99 = scmp.eq.s32.totalorder %s19, 1
    %p100 = por %p98, %p99
    %p101 = scmp.ne.s32.totalorder %s92, %s93
    %p102 = scmp.eq.s32.totalorder %s19, 0
    %p103 = por %p101, %p102
    %p104 = scmp.ne.s32.totalorder %s92, %s93
    %p105 = scmp.eq.s32.totalorder %s20, 1
    %p106 = por %p104, %p105
    %p108 = scmp.ne.s32.totalorder %s93, %s107
    %p109 = scmp.eq.s32.totalorder %s20, 0
    %p110 = por %p108, %p109
    %s112 = sadd.s32 %s111, 1
    %p115 = scmp.eq.s32.totalorder %s14, 1
    %p116 = scmp.ne.s32.totalorder %s111, %s113
    %p117 = scmp.eq.s32.totalorder %s14, 0
    %p118 = por %p116, %p117
    %p119 = scmp.ne.s32.totalorder %s111, %s113
    %p120 = scmp.eq.s32.totalorder %s19, 1
    %p121 = por %p119, %p120
    %p122 = scmp.ne.s32.totalorder %s113, %s114
    %p123 = scmp.eq.s32.totalorder %s19, 0
    %p124 = por %p122, %p123
    %p125 = scmp.ne.s32.totalorder %s113, %s114
    %p126 = scmp.eq.s32.totalorder %s20, 1
    %p127 = por %p125, %p126
    %p129 = scmp.ne.s32.totalorder %s114, %s128
    %p130 = scmp.eq.s32.totalorder %s20, 0
    %p131 = por %p129, %p130
    %s133 = sadd.s32 %s132, 1
    %p136 = scmp.eq.s32.totalorder %s14, 1
    %p137 = scmp.ne.s32.totalorder %s132, %s134
    %p138 = scmp.eq.s32.totalorder %s14, 0
    %p139 = por %p137, %p138
    %p140 = scmp.ne.s32.totalorder %s132, %s134
    %p141 = scmp.eq.s32.totalorder %s19, 1
    %p142 = por %p140, %p141
    %p143 = scmp.ne.s32.totalorder %s134, %s135
    %p144 = scmp.eq.s32.totalorder %s19, 0
    %p145 = por %p143, %p144
    %p146 = scmp.ne.s32.totalorder %s134, %s135
    %p147 = scmp.eq.s32.totalorder %s20, 1
    %p148 = por %p146, %p147
    %p150 = scmp.ne.s32.totalorder %s135, %s149
    %p151 = scmp.eq.s32.totalorder %s20, 0
    %p152 = por %p150, %p151
    %s154 = sadd.s32 %s153, 1
    %p157 = scmp.eq.s32.totalorder %s14, 1
    %p158 = scmp.ne.s32.totalorder %s153, %s155
    %p159 = scmp.eq.s32.totalorder %s14, 0
    %p160 = por %p158, %p159
    %p161 = scmp.ne.s32.totalorder %s153, %s155
    %p162 = scmp.eq.s32.totalorder %s19, 1
    %p163 = por %p161, %p162
    %p164 = scmp.ne.s32.totalorder %s155, %s156
    %p165 = scmp.eq.s32.totalorder %s19, 0
    %p166 = por %p164, %p165
    %p167 = scmp.ne.s32.totalorder %s155, %s156
    %p168 = scmp.eq.s32.totalorder %s20, 1
    %p169 = por %p167, %p168
    %p171 = scmp.ne.s32.totalorder %s156, %s170
    %p172 = scmp.eq.s32.totalorder %s20, 0
    %p173 = por %p171, %p172
    %s174 = ssub.s32 %s14, %s21
    %p175 = scmp.eq.s32.totalorder %s174, 0
    %s177 = sadd.s32 %s176, 1
    %s178 = scalar_select %p175, %s176, %s177
    %p181 = pneg %p175
    %p182 = scmp.eq.s32.totalorder %s14, 1
    %p183 = por %p181, %p182
    %p184 = scmp.ne.s32.totalorder %s176, %s179
    %p185 = scmp.eq.s32.totalorder %s14, 0
    %p186 = por %p184, %p185
    %p187 = scmp.ne.s32.totalorder %s176, %s179
    %p188 = scmp.eq.s32.totalorder %s19, 1
    %p189 = por %p187, %p188
    %p190 = scmp.ne.s32.totalorder %s179, %s180
    %p191 = scmp.eq.s32.totalorder %s19, 0
    %p192 = por %p190, %p191
    %p193 = scmp.ne.s32.totalorder %s179, %s180
    %p194 = scmp.eq.s32.totalorder %s20, 1
    %p195 = por %p193, %p194
    %p197 = scmp.ne.s32.totalorder %s180, %s196
    %p198 = scmp.eq.s32.totalorder %s20, 0
    %p199 = por %p197, %p198
    %s200 = ssub.s32 %s14, %s21
    %p201 = scmp.eq.s32.totalorder %s200, 0
    %s203 = sadd.s32 %s202, 1
    %s204 = scalar_select %p201, %s202, %s203
    %p207 = pneg %p201
    %p208 = scmp.eq.s32.totalorder %s14, 1
    %p209 = por %p207, %p208
    %p210 = scmp.ne.s32.totalorder %s202, %s205
    %p211 = scmp.eq.s32.totalorder %s14, 0
    %p212 = por %p210, %p211
    %p213 = scmp.ne.s32.totalorder %s202, %s205
    %p214 = scmp.eq.s32.totalorder %s19, 1
    %p215 = por %p213, %p214
    %p216 = scmp.ne.s32.totalorder %s205, %s206
    %p217 = scmp.eq.s32.totalorder %s19, 0
    %p218 = por %p216, %p217
    %p219 = scmp.ne.s32.totalorder %s205, %s206
    %p220 = scmp.eq.s32.totalorder %s20, 1
    %p221 = por %p219, %p220
    %p223 = scmp.ne.s32.totalorder %s206, %s222
    %p224 = scmp.eq.s32.totalorder %s20, 0
    %p225 = por %p223, %p224
    %p226 = scmp.le.s32.totalorder 1, %s14
    %p227 = scmp.lt.s32.totalorder %s14, 3
    %p228 = pnand %p226, %p227
    %p229 = pneg %p228
    // Predicated region
    $region9: #{unet_up_block_forward.3} parent=5 // pred_check
      _
    $region10: #{unet_up_block_forward.3} parent=5 // pred_check_branch
      %231 = sbr.rel (%p228) target = $region12
    $region11: #{unet_up_block_forward.3} parent=5 // pred_region
      %s232 = ssub.s32 %s14, 1
      // Predicated region
      $region13: #{unet_up_block_forward.3} parent=11 // pred_check
        %p233 = pneg %p35
      $region14: #{unet_up_block_forward.3} parent=11 // pred_check_branch
        %235 = sbr.rel (%p233) target = $region16
      $region15: #{unet_up_block_forward.3} parent=11 // pred_region
        _
      $region16: #{unet_up_block_forward.3} parent=11 // pred_fallthru
        _
      // Predicated region
      $region17: #{unet_up_block_forward.3} parent=11 // pred_check
        %p236 = pneg %p56
      $region18: #{unet_up_block_forward.3} parent=11 // pred_check_branch
        %238 = sbr.rel (%p236) target = $region20
      $region19: #{unet_up_block_forward.3} parent=11 // pred_region
        _
      $region20: #{unet_up_block_forward.3} parent=11 // pred_fallthru
        _
      // Predicated region
      $region21: #{unet_up_block_forward.3} parent=11 // pred_check
        %p239 = pneg %p103
      $region22: #{unet_up_block_forward.3} parent=11 // pred_check_branch
        %241 = sbr.rel (%p239) target = $region24
      $region23: #{unet_up_block_forward.3} parent=11 // pred_region
        _
      $region24: #{unet_up_block_forward.3} parent=11 // pred_fallthru
        _
      // Predicated region
      $region25: #{unet_up_block_forward.3} parent=11 // pred_check
        %p242 = pneg %p124
      $region26: #{unet_up_block_forward.3} parent=11 // pred_check_branch
        %244 = sbr.rel (%p242) target = $region28
      $region27: #{unet_up_block_forward.3} parent=11 // pred_region
        _
      $region28: #{unet_up_block_forward.3} parent=11 // pred_fallthru
        _
      // Predicated region
      $region29: #{unet_up_block_forward.3} parent=11 // pred_check
        %p245 = pneg %p145
      $region30: #{unet_up_block_forward.3} parent=11 // pred_check_branch
        %247 = sbr.rel (%p245) target = $region32
      $region31: #{unet_up_block_forward.3} parent=11 // pred_region
        _
      $region32: #{unet_up_block_forward.3} parent=11 // pred_fallthru
        _
      // Predicated region
      $region33: #{unet_up_block_forward.3} parent=11 // pred_check
        %p248 = pneg %p166
      $region34: #{unet_up_block_forward.3} parent=11 // pred_check_branch
        %250 = sbr.rel (%p248) target = $region36
      $region35: #{unet_up_block_forward.3} parent=11 // pred_region
        _
      $region36: #{unet_up_block_forward.3} parent=11 // pred_fallthru
        _
    $region12: #{unet_up_block_forward.3} parent=5 // pred_fallthru
      _
    %p251 = scmp.lt.s32.totalorder %s14, 2
    // Predicated region
    $region37: #{unet_up_block_forward.3} parent=5 // pred_check
      %p252 = pneg %p251
    $region38: #{unet_up_block_forward.3} parent=5 // pred_check_branch
      %254 = sbr.rel (%p252) target = $region40
    $region39: #{unet_up_block_forward.3} parent=5 // pred_region
      // Predicated region
      $region41: #{unet_up_block_forward.3} parent=39 // pred_check
        %p255 = pneg %p76
      $region42: #{unet_up_block_forward.3} parent=39 // pred_check_branch
        %257 = sbr.rel (%p255) target = $region44
      $region43: #{unet_up_block_forward.3} parent=39 // pred_region
        %p258 = scmp.lt.s32.totalorder %s14, 1
        %s259 = scalar_select %p258, %s14, 1
        %s260 = smul.addr %s259, 8
        %s261 = smul.addr %s260, 8
        %s262 = scalar_lea.vmem %s2, %s261
      $region44: #{unet_up_block_forward.3} parent=39 // pred_fallthru
        _
      // Predicated region
      $region45: #{unet_up_block_forward.3} parent=39 // pred_check
        %p263 = pneg %p186
      $region46: #{unet_up_block_forward.3} parent=39 // pred_check_branch
        %265 = sbr.rel (%p263) target = $region48
      $region47: #{unet_up_block_forward.3} parent=39 // pred_region
        %p266 = scmp.lt.s32.totalorder %s14, 1
        %s267 = scalar_select %p266, %s14, 1
        %s268 = smul.addr %s267, 16
        %s269 = smul.addr %s268, 8
        %s270 = scalar_lea.vmem %s7, %s269
      $region48: #{unet_up_block_forward.3} parent=39 // pred_fallthru
        _
    $region40: #{unet_up_block_forward.3} parent=5 // pred_fallthru
      _
    %p271 = scmp.le.s32.totalorder 1, %s14
    %p272 = scmp.lt.s32.totalorder %s14, 3
    %p273 = pnand %p271, %p272
    %p274 = pneg %p273
    // Predicated region
    $region49: #{unet_up_block_forward.3} parent=5 // pred_check
      _
    $region50: #{unet_up_block_forward.3} parent=5 // pred_check_branch
      %276 = sbr.rel (%p273) target = $region52
    $region51: #{unet_up_block_forward.3} parent=5 // pred_region
      %s277 = ssub.s32 %s14, 1
      %p278 = pneg %p35
      %p279 = pneg %p32
      %p280 = pneg %p56
      %p281 = pneg %p53
      %p282 = scmp.lt.s32.totalorder %s19, 1
      %s283 = scalar_select %p282, %s19, 1
      %s284 = smul.addr %s283, 8
      %s285 = smul.addr %s284, 8
      %s286 = scalar_lea.vmem %s2, %s285
      %p287 = pneg %p82
      %p288 = pneg %p79
      %p289 = pneg %p103
      %p290 = pneg %p100
      %p291 = pneg %p124
      %p292 = pneg %p121
      %p293 = pneg %p145
      %p294 = pneg %p142
      %p295 = pneg %p166
      %p296 = pneg %p163
      %p297 = scmp.lt.s32.totalorder %s19, 1
      %s298 = scalar_select %p297, %s19, 1
      %s299 = smul.addr %s298, 16
      %s300 = smul.addr %s299, 8
      %s301 = scalar_lea.vmem %s7, %s300
      %p302 = pneg %p192
      %p303 = pneg %p189
      %p304 = pneg %p218
      %p305 = pneg %p215
      %p306 = scmp.lt.s32.totalorder %s19, 1
      %s307 = scalar_select %p306, %s19, 1
      %s308 = smul.addr %s307, 16
      %s309 = smul.addr %s308, 8
      %s310 = scalar_lea.vmem %s8, %s309
      %p311 = scmp.lt.s32.totalorder %s19, 1
      %s312 = scalar_select %p311, %s19, 1
      %s313 = smul.addr %s312, 8
      %s314 = smul.addr %s313, 8
      %s315 = scalar_lea.vmem %s2, %s314
      %p316 = scmp.lt.s32.totalorder %s19, 1
      %s317 = scalar_select %p316, %s19, 1
      %s318 = smul.addr %s317, 16
      %s319 = smul.addr %s318, 8
      %s320 = scalar_lea.vmem %s7, %s319
      %p321 = scmp.lt.s32.totalorder %s19, 1
      %s322 = scalar_select %p321, %s19, 1
      %s323 = smul.addr %s322, 16
      %s324 = smul.addr %s323, 8
      %s325 = scalar_lea.vmem %s8, %s324
      %v326 = vld [vmem:[%s0] sm:$0xff]
      %v327 = vld [vmem:[%s1] sm:$0xff]
      %v328 = vld [vmem:[%s315] sm:$0xff]
      %v329 = vld [vmem:[%s315 + $0x8] sm:$0xff]
      %v330 = vld [vmem:[%s315 + $0x10] sm:$0xff]
      %v331 = vld [vmem:[%s315 + $0x18] sm:$0xff]
      %v332 = vld [vmem:[%s315 + $0x20] sm:$0xff]
      %v333 = vld [vmem:[%s315 + $0x28] sm:$0xff]
      %v334 = vld [vmem:[%s315 + $0x30] sm:$0xff]
      %v335 = vld [vmem:[%s315 + $0x38] sm:$0xff]
      %336 = vrot.lane.b32.xlu0 %v328, 33
      %v337 = vpop.permute.xlu0 %336
      %338 = vrot.lane.b32.xlu0 %v329, 33
      %v339 = vpop.permute.xlu0 %338
      %340 = vrot.lane.b32.xlu0 %v330, 33
      %v341 = vpop.permute.xlu0 %340
      %342 = vrot.lane.b32.xlu0 %v331, 33
      %v343 = vpop.permute.xlu0 %342
      %344 = vrot.lane.b32.xlu0 %v332, 33
      %v345 = vpop.permute.xlu0 %344
      %346 = vrot.lane.b32.xlu0 %v333, 33
      %v347 = vpop.permute.xlu0 %346
      %348 = vrot.lane.b32.xlu0 %v334, 33
      %v349 = vpop.permute.xlu0 %348
      %350 = vrot.lane.b32.xlu0 %v335, 33
      %v351 = vpop.permute.xlu0 %350
      %v352 = vlaneseq
      %v353 = vand.u32 %v352, 127
      %vm354 = vcmp.lt.s32.totalorder %v353, 33
      %v355 = vsel %vm354, %v349, %v351
      %v356 = vsel %vm354, %v347, %v349
      %v357 = vsel %vm354, %v345, %v347
      %v358 = vsel %vm354, %v343, %v345
      %v359 = vsel %vm354, %v341, %v343
      %v360 = vsel %vm354, %v339, %v341
      %v361 = vsel %vm354, %v337, %v339
      %v362 = vsel %vm354, %v351, %v337
      %vm363 = vcmp.ge.s32.totalorder %v326, 1
      %vm364 = vcmp.ge.s32.totalorder %v327, 1
      %vm365 = vmand %vm363, %vm364
      %v366 = vsel %vm365, 1, 0
      %v367 = vperm.slane %v366, 0
      %v368 = vperm.slane %v366, 1
      %v369 = vperm.slane %v366, 2
      %v370 = vperm.slane %v366, 3
      %v371 = vperm.slane %v366, 4
      %v372 = vperm.slane %v366, 5
      %v373 = vperm.slane %v366, 6
      %v374 = vperm.slane %v366, 7
      %vm375 = vcmp.eq.s32.totalorder %v367, 1
      %vm376 = vcmp.eq.s32.totalorder %v368, 1
      %vm377 = vcmp.eq.s32.totalorder %v369, 1
      %vm378 = vcmp.eq.s32.totalorder %v370, 1
      %vm379 = vcmp.eq.s32.totalorder %v371, 1
      %vm380 = vcmp.eq.s32.totalorder %v372, 1
      %vm381 = vcmp.eq.s32.totalorder %v373, 1
      %vm382 = vcmp.eq.s32.totalorder %v374, 1
      %v383 = vsel %vm375, %v362, 0.0
      %v384 = vsel %vm376, %v361, 0.0
      %v385 = vsel %vm377, %v360, 0.0
      %v386 = vsel %vm378, %v359, 0.0
      %v387 = vsel %vm379, %v358, 0.0
      %v388 = vsel %vm380, %v357, 0.0
      %v389 = vsel %vm381, %v356, 0.0
      %v390 = vsel %vm382, %v355, 0.0
      %391 = vrot.lane.b32.xlu0 %v328, 32
      %v392 = vpop.permute.xlu0 %391
      %393 = vrot.lane.b32.xlu0 %v329, 32
      %v394 = vpop.permute.xlu0 %393
      %395 = vrot.lane.b32.xlu0 %v330, 32
      %v396 = vpop.permute.xlu0 %395
      %397 = vrot.lane.b32.xlu0 %v331, 32
      %v398 = vpop.permute.xlu0 %397
      %399 = vrot.lane.b32.xlu0 %v332, 32
      %v400 = vpop.permute.xlu0 %399
      %401 = vrot.lane.b32.xlu0 %v333, 32
      %v402 = vpop.permute.xlu0 %401
      %403 = vrot.lane.b32.xlu0 %v334, 32
      %v404 = vpop.permute.xlu0 %403
      %405 = vrot.lane.b32.xlu0 %v335, 32
      %v406 = vpop.permute.xlu0 %405
      %vm407 = vcmp.lt.s32.totalorder %v353, 32
      %v408 = vsel %vm407, %v404, %v406
      %v409 = vsel %vm407, %v402, %v404
      %v410 = vsel %vm407, %v400, %v402
      %v411 = vsel %vm407, %v398, %v400
      %v412 = vsel %vm407, %v396, %v398
      %v413 = vsel %vm407, %v394, %v396
      %v414 = vsel %vm407, %v392, %v394
      %v415 = vsel %vm407, %v406, %v392
      %v416 = vsel %vm364, 1, 0
      %v417 = vperm.slane %v416, 0
      %v418 = vperm.slane %v416, 1
      %v419 = vperm.slane %v416, 2
      %v420 = vperm.slane %v416, 3
      %v421 = vperm.slane %v416, 4
      %v422 = vperm.slane %v416, 5
      %v423 = vperm.slane %v416, 6
      %v424 = vperm.slane %v416, 7
      %vm425 = vcmp.eq.s32.totalorder %v417, 1
      %vm426 = vcmp.eq.s32.totalorder %v418, 1
      %vm427 = vcmp.eq.s32.totalorder %v419, 1
      %vm428 = vcmp.eq.s32.totalorder %v420, 1
      %vm429 = vcmp.eq.s32.totalorder %v421, 1
      %vm430 = vcmp.eq.s32.totalorder %v422, 1
      %vm431 = vcmp.eq.s32.totalorder %v423, 1
      %vm432 = vcmp.eq.s32.totalorder %v424, 1
      %v433 = vsel %vm425, %v415, 0.0
      %v434 = vsel %vm426, %v414, 0.0
      %v435 = vsel %vm427, %v413, 0.0
      %v436 = vsel %vm428, %v412, 0.0
      %v437 = vsel %vm429, %v411, 0.0
      %v438 = vsel %vm430, %v410, 0.0
      %v439 = vsel %vm431, %v409, 0.0
      %v440 = vsel %vm432, %v408, 0.0
      %441 = vrot.lane.b32.xlu0 %v328, 31
      %v442 = vpop.permute.xlu0 %441
      %443 = vrot.lane.b32.xlu0 %v329, 31
      %v444 = vpop.permute.xlu0 %443
      %445 = vrot.lane.b32.xlu0 %v330, 31
      %v446 = vpop.permute.xlu0 %445
      %447 = vrot.lane.b32.xlu0 %v331, 31
      %v448 = vpop.permute.xlu0 %447
      %449 = vrot.lane.b32.xlu0 %v332, 31
      %v450 = vpop.permute.xlu0 %449
      %451 = vrot.lane.b32.xlu0 %v333, 31
      %v452 = vpop.permute.xlu0 %451
      %453 = vrot.lane.b32.xlu0 %v334, 31
      %v454 = vpop.permute.xlu0 %453
      %455 = vrot.lane.b32.xlu0 %v335, 31
      %v456 = vpop.permute.xlu0 %455
      %vm457 = vcmp.lt.s32.totalorder %v353, 31
      %v458 = vsel %vm457, %v454, %v456
      %v459 = vsel %vm457, %v452, %v454
      %v460 = vsel %vm457, %v450, %v452
      %v461 = vsel %vm457, %v448, %v450
      %v462 = vsel %vm457, %v446, %v448
      %v463 = vsel %vm457, %v444, %v446
      %v464 = vsel %vm457, %v442, %v444
      %v465 = vsel %vm457, %v456, %v442
      %vm466 = vcmp.lt.s32.totalorder %v326, 31
      %vm467 = vmand %vm466, %vm364
      %v468 = vsel %vm467, 1, 0
      %v469 = vperm.slane %v468, 0
      %v470 = vperm.slane %v468, 1
      %v471 = vperm.slane %v468, 2
      %v472 = vperm.slane %v468, 3
      %v473 = vperm.slane %v468, 4
      %v474 = vperm.slane %v468, 5
      %v475 = vperm.slane %v468, 6
      %v476 = vperm.slane %v468, 7
      %vm477 = vcmp.eq.s32.totalorder %v469, 1
      %vm478 = vcmp.eq.s32.totalorder %v470, 1
      %vm479 = vcmp.eq.s32.totalorder %v471, 1
      %vm480 = vcmp.eq.s32.totalorder %v472, 1
      %vm481 = vcmp.eq.s32.totalorder %v473, 1
      %vm482 = vcmp.eq.s32.totalorder %v474, 1
      %vm483 = vcmp.eq.s32.totalorder %v475, 1
      %vm484 = vcmp.eq.s32.totalorder %v476, 1
      %v485 = vsel %vm477, %v465, 0.0
      %v486 = vsel %vm478, %v464, 0.0
      %v487 = vsel %vm479, %v463, 0.0
      %v488 = vsel %vm480, %v462, 0.0
      %v489 = vsel %vm481, %v461, 0.0
      %v490 = vsel %vm482, %v460, 0.0
      %v491 = vsel %vm483, %v459, 0.0
      %v492 = vsel %vm484, %v458, 0.0
      %493 = vrot.lane.b32.xlu0 %v328, 1
      %v494 = vpop.permute.xlu0 %493
      %495 = vrot.lane.b32.xlu0 %v329, 1
      %v496 = vpop.permute.xlu0 %495
      %497 = vrot.lane.b32.xlu0 %v330, 1
      %v498 = vpop.permute.xlu0 %497
      %499 = vrot.lane.b32.xlu0 %v331, 1
      %v500 = vpop.permute.xlu0 %499
      %501 = vrot.lane.b32.xlu0 %v332, 1
      %v502 = vpop.permute.xlu0 %501
      %503 = vrot.lane.b32.xlu0 %v333, 1
      %v504 = vpop.permute.xlu0 %503
      %505 = vrot.lane.b32.xlu0 %v334, 1
      %v506 = vpop.permute.xlu0 %505
      %507 = vrot.lane.b32.xlu0 %v335, 1
      %v508 = vpop.permute.xlu0 %507
      %vm509 = vcmp.lt.s32.totalorder %v353, 1
      %v510 = vsel %vm509, %v506, %v508
      %v511 = vsel %vm509, %v504, %v506
      %v512 = vsel %vm509, %v502, %v504
      %v513 = vsel %vm509, %v500, %v502
      %v514 = vsel %vm509, %v498, %v500
      %v515 = vsel %vm509, %v496, %v498
      %v516 = vsel %vm509, %v494, %v496
      %v517 = vsel %vm509, %v508, %v494
      %v518 = vsel %vm363, 1, 0
      %v519 = vperm.slane %v518, 0
      %v520 = vperm.slane %v518, 1
      %v521 = vperm.slane %v518, 2
      %v522 = vperm.slane %v518, 3
      %v523 = vperm.slane %v518, 4
      %v524 = vperm.slane %v518, 5
      %v525 = vperm.slane %v518, 6
      %v526 = vperm.slane %v518, 7
      %vm527 = vcmp.eq.s32.totalorder %v519, 1
      %vm528 = vcmp.eq.s32.totalorder %v520, 1
      %vm529 = vcmp.eq.s32.totalorder %v521, 1
      %vm530 = vcmp.eq.s32.totalorder %v522, 1
      %vm531 = vcmp.eq.s32.totalorder %v523, 1
      %vm532 = vcmp.eq.s32.totalorder %v524, 1
      %vm533 = vcmp.eq.s32.totalorder %v525, 1
      %vm534 = vcmp.eq.s32.totalorder %v526, 1
      %v535 = vsel %vm527, %v517, 0.0
      %v536 = vsel %vm528, %v516, 0.0
      %v537 = vsel %vm529, %v515, 0.0
      %v538 = vsel %vm530, %v514, 0.0
      %v539 = vsel %vm531, %v513, 0.0
      %v540 = vsel %vm532, %v512, 0.0
      %v541 = vsel %vm533, %v511, 0.0
      %v542 = vsel %vm534, %v510, 0.0
      %543 = vrot.lane.b32.xlu0 %v328, 127
      %v544 = vpop.permute.xlu0 %543
      %545 = vrot.lane.b32.xlu0 %v329, 127
      %v546 = vpop.permute.xlu0 %545
      %547 = vrot.lane.b32.xlu0 %v330, 127
      %v548 = vpop.permute.xlu0 %547
      %549 = vrot.lane.b32.xlu0 %v331, 127
      %v550 = vpop.permute.xlu0 %549
      %551 = vrot.lane.b32.xlu0 %v332, 127
      %v552 = vpop.permute.xlu0 %551
      %553 = vrot.lane.b32.xlu0 %v333, 127
      %v554 = vpop.permute.xlu0 %553
      %555 = vrot.lane.b32.xlu0 %v334, 127
      %v556 = vpop.permute.xlu0 %555
      %557 = vrot.lane.b32.xlu0 %v335, 127
      %v558 = vpop.permute.xlu0 %557
      %vm559 = vcmp.lt.s32.totalorder %v353, 127
      %v560 = vsel %vm559, %v556, %v558
      %v561 = vsel %vm559, %v554, %v556
      %v562 = vsel %vm559, %v552, %v554
      %v563 = vsel %vm559, %v550, %v552
      %v564 = vsel %vm559, %v548, %v550
      %v565 = vsel %vm559, %v546, %v548
      %v566 = vsel %vm559, %v544, %v546
      %v567 = vsel %vm559, %v558, %v544
      %v568 = vsel %vm466, 1, 0
      %v569 = vperm.slane %v568, 0
      %v570 = vperm.slane %v568, 1
      %v571 = vperm.slane %v568, 2
      %v572 = vperm.slane %v568, 3
      %v573 = vperm.slane %v568, 4
      %v574 = vperm.slane %v568, 5
      %v575 = vperm.slane %v568, 6
      %v576 = vperm.slane %v568, 7
      %vm577 = vcmp.eq.s32.totalorder %v569, 1
      %vm578 = vcmp.eq.s32.totalorder %v570, 1
      %vm579 = vcmp.eq.s32.totalorder %v571, 1
      %vm580 = vcmp.eq.s32.totalorder %v572, 1
      %vm581 = vcmp.eq.s32.totalorder %v573, 1
      %vm582 = vcmp.eq.s32.totalorder %v574, 1
      %vm583 = vcmp.eq.s32.totalorder %v575, 1
      %vm584 = vcmp.eq.s32.totalorder %v576, 1
      %v585 = vsel %vm577, %v566, 0.0
      %v586 = vsel %vm578, %v565, 0.0
      %v587 = vsel %vm579, %v564, 0.0
      %v588 = vsel %vm580, %v563, 0.0
      %v589 = vsel %vm581, %v562, 0.0
      %v590 = vsel %vm582, %v561, 0.0
      %v591 = vsel %vm583, %v560, 0.0
      %v592 = vsel %vm584, %v567, 0.0
      %593 = vrot.lane.b32.xlu0 %v328, 97
      %v594 = vpop.permute.xlu0 %593
      %595 = vrot.lane.b32.xlu0 %v329, 97
      %v596 = vpop.permute.xlu0 %595
      %597 = vrot.lane.b32.xlu0 %v330, 97
      %v598 = vpop.permute.xlu0 %597
      %599 = vrot.lane.b32.xlu0 %v331, 97
      %v600 = vpop.permute.xlu0 %599
      %601 = vrot.lane.b32.xlu0 %v332, 97
      %v602 = vpop.permute.xlu0 %601
      %603 = vrot.lane.b32.xlu0 %v333, 97
      %v604 = vpop.permute.xlu0 %603
      %605 = vrot.lane.b32.xlu0 %v334, 97
      %v606 = vpop.permute.xlu0 %605
      %607 = vrot.lane.b32.xlu0 %v335, 97
      %v608 = vpop.permute.xlu0 %607
      %vm609 = vcmp.lt.s32.totalorder %v353, 97
      %v610 = vsel %vm609, %v606, %v608
      %v611 = vsel %vm609, %v604, %v606
      %v612 = vsel %vm609, %v602, %v604
      %v613 = vsel %vm609, %v600, %v602
      %v614 = vsel %vm609, %v598, %v600
      %v615 = vsel %vm609, %v596, %v598
      %v616 = vsel %vm609, %v594, %v596
      %v617 = vsel %vm609, %v608, %v594
      %vm618 = vcmp.lt.s32.totalorder %v327, 31
      %vm619 = vmand %vm363, %vm618
      %v620 = vsel %vm619, 1, 0
      %v621 = vperm.slane %v620, 0
      %v622 = vperm.slane %v620, 1
      %v623 = vperm.slane %v620, 2
      %v624 = vperm.slane %v620, 3
      %v625 = vperm.slane %v620, 4
      %v626 = vperm.slane %v620, 5
      %v627 = vperm.slane %v620, 6
      %v628 = vperm.slane %v620, 7
      %vm629 = vcmp.eq.s32.totalorder %v621, 1
      %vm630 = vcmp.eq.s32.totalorder %v622, 1
      %vm631 = vcmp.eq.s32.totalorder %v623, 1
      %vm632 = vcmp.eq.s32.totalorder %v624, 1
      %vm633 = vcmp.eq.s32.totalorder %v625, 1
      %vm634 = vcmp.eq.s32.totalorder %v626, 1
      %vm635 = vcmp.eq.s32.totalorder %v627, 1
      %vm636 = vcmp.eq.s32.totalorder %v628, 1
      %v637 = vsel %vm629, %v616, 0.0
      %v638 = vsel %vm630, %v615, 0.0
      %v639 = vsel %vm631, %v614, 0.0
      %v640 = vsel %vm632, %v613, 0.0
      %v641 = vsel %vm633, %v612, 0.0
      %v642 = vsel %vm634, %v611, 0.0
      %v643 = vsel %vm635, %v610, 0.0
      %v644 = vsel %vm636, %v617, 0.0
      %645 = vrot.lane.b32.xlu0 %v328, 96
      %v646 = vpop.permute.xlu0 %645
      %647 = vrot.lane.b32.xlu0 %v329, 96
      %v648 = vpop.permute.xlu0 %647
      %649 = vrot.lane.b32.xlu0 %v330, 96
      %v650 = vpop.permute.xlu0 %649
      %651 = vrot.lane.b32.xlu0 %v331, 96
      %v652 = vpop.permute.xlu0 %651
      %653 = vrot.lane.b32.xlu0 %v332, 96
      %v654 = vpop.permute.xlu0 %653
      %655 = vrot.lane.b32.xlu0 %v333, 96
      %v656 = vpop.permute.xlu0 %655
      %657 = vrot.lane.b32.xlu0 %v334, 96
      %v658 = vpop.permute.xlu0 %657
      %659 = vrot.lane.b32.xlu0 %v335, 96
      %v660 = vpop.permute.xlu0 %659
      %vm661 = vcmp.lt.s32.totalorder %v353, 96
      %v662 = vsel %vm661, %v658, %v660
      %v663 = vsel %vm661, %v656, %v658
      %v664 = vsel %vm661, %v654, %v656
      %v665 = vsel %vm661, %v652, %v654
      %v666 = vsel %vm661, %v650, %v652
      %v667 = vsel %vm661, %v648, %v650
      %v668 = vsel %vm661, %v646, %v648
      %v669 = vsel %vm661, %v660, %v646
      %v670 = vsel %vm618, 1, 0
      %v671 = vperm.slane %v670, 0
      %v672 = vperm.slane %v670, 1
      %v673 = vperm.slane %v670, 2
      %v674 = vperm.slane %v670, 3
      %v675 = vperm.slane %v670, 4
      %v676 = vperm.slane %v670, 5
      %v677 = vperm.slane %v670, 6
      %v678 = vperm.slane %v670, 7
      %vm679 = vcmp.eq.s32.totalorder %v671, 1
      %vm680 = vcmp.eq.s32.totalorder %v672, 1
      %vm681 = vcmp.eq.s32.totalorder %v673, 1
      %vm682 = vcmp.eq.s32.totalorder %v674, 1
      %vm683 = vcmp.eq.s32.totalorder %v675, 1
      %vm684 = vcmp.eq.s32.totalorder %v676, 1
      %vm685 = vcmp.eq.s32.totalorder %v677, 1
      %vm686 = vcmp.eq.s32.totalorder %v678, 1
      %v687 = vsel %vm679, %v668, 0.0
      %v688 = vsel %vm680, %v667, 0.0
      %v689 = vsel %vm681, %v666, 0.0
      %v690 = vsel %vm682, %v665, 0.0
      %v691 = vsel %vm683, %v664, 0.0
      %v692 = vsel %vm684, %v663, 0.0
      %v693 = vsel %vm685, %v662, 0.0
      %v694 = vsel %vm686, %v669, 0.0
      %695 = vrot.lane.b32.xlu0 %v328, 95
      %v696 = vpop.permute.xlu0 %695
      %697 = vrot.lane.b32.xlu0 %v329, 95
      %v698 = vpop.permute.xlu0 %697
      %699 = vrot.lane.b32.xlu0 %v330, 95
      %v700 = vpop.permute.xlu0 %699
      %701 = vrot.lane.b32.xlu0 %v331, 95
      %v702 = vpop.permute.xlu0 %701
      %703 = vrot.lane.b32.xlu0 %v332, 95
      %v704 = vpop.permute.xlu0 %703
      %705 = vrot.lane.b32.xlu0 %v333, 95
      %v706 = vpop.permute.xlu0 %705
      %707 = vrot.lane.b32.xlu0 %v334, 95
      %v708 = vpop.permute.xlu0 %707
      %709 = vrot.lane.b32.xlu0 %v335, 95
      %v710 = vpop.permute.xlu0 %709
      %vm711 = vcmp.lt.s32.totalorder %v353, 95
      %v712 = vsel %vm711, %v708, %v710
      %v713 = vsel %vm711, %v706, %v708
      %v714 = vsel %vm711, %v704, %v706
      %v715 = vsel %vm711, %v702, %v704
      %v716 = vsel %vm711, %v700, %v702
      %v717 = vsel %vm711, %v698, %v700
      %v718 = vsel %vm711, %v696, %v698
      %v719 = vsel %vm711, %v710, %v696
      %vm720 = vmand %vm466, %vm618
      %v721 = vsel %vm720, 1, 0
      %v722 = vperm.slane %v721, 0
      %v723 = vperm.slane %v721, 1
      %v724 = vperm.slane %v721, 2
      %v725 = vperm.slane %v721, 3
      %v726 = vperm.slane %v721, 4
      %v727 = vperm.slane %v721, 5
      %v728 = vperm.slane %v721, 6
      %v729 = vperm.slane %v721, 7
      %vm730 = vcmp.eq.s32.totalorder %v722, 1
      %vm731 = vcmp.eq.s32.totalorder %v723, 1
      %vm732 = vcmp.eq.s32.totalorder %v724, 1
      %vm733 = vcmp.eq.s32.totalorder %v725, 1
      %vm734 = vcmp.eq.s32.totalorder %v726, 1
      %vm735 = vcmp.eq.s32.totalorder %v727, 1
      %vm736 = vcmp.eq.s32.totalorder %v728, 1
      %vm737 = vcmp.eq.s32.totalorder %v729, 1
      %v738 = vsel %vm730, %v718, 0.0
      %v739 = vsel %vm731, %v717, 0.0
      %v740 = vsel %vm732, %v716, 0.0
      %v741 = vsel %vm733, %v715, 0.0
      %v742 = vsel %vm734, %v714, 0.0
      %v743 = vsel %vm735, %v713, 0.0
      %v744 = vsel %vm736, %v712, 0.0
      %v745 = vsel %vm737, %v719, 0.0
      %v746 = vld [vmem:[%s3] sm:$0xff]
      %v747 = vld [vmem:[%s3 + $0x8] sm:$0xff]
      %v748 = vld [vmem:[%s4] sm:$0xff]
      %v749 = vld [vmem:[%s4 + $0x8] sm:$0xff]
      %751 = vset.pattern.permute.xlu0 0
      %752 = vperm.xlu0 %751, %v748
      %v753 = vpop.permute.xlu0 %752
      %756 = vset.pattern.permute.xlu0 0
      %757 = vperm.xlu0 %756, %v749
      %v758 = vpop.permute.xlu0 %757
      %vm760 = vcmask 588800
      %v762 = vsel %vm760, %v746, 0
      %v765 = vsel %vm760, %v747, 0
      %767 = vmatpush.msra.mxu0 0.0
      %768 = vmatpush.msra.mxu0 0.0
      %769 = vmatpush.msra.mxu0 0.0
      %770 = vmatpush.msra.mxu0 0.0
      %771 = vmatpush.msra.mxu0 0.0
      %772 = vmatpush.msra.mxu0 0.0
      %773 = vmatpush.msra.mxu0 0.0
      %774 = vmatpush.msra.mxu0 %v738
      %775 = vmatpush.msra.mxu0 %v687
      %776 = vmatpush.msra.mxu0 %v637
      %777 = vmatpush.msra.mxu0 %v585
      %778 = vmatpush.msra.mxu0 %v328
      %779 = vmatpush.msra.mxu0 %v535
      %780 = vmatpush.msra.mxu0 %v485
      %781 = vmatpush.msra.mxu0 %v433
      %782 = vmatpush.msra.mxu0 %v383
      %783 = vmatmul.f32.gmra.mxu0 %v762
      %v784 = vpop.f32.mrf.mxu0
      %v785 = vadd.f32 %v753, %v784
      %786 = vmatmul.f32.gmra.mxu0 %v765
      %v787 = vpop.f32.mrf.mxu0
      %v788 = vadd.f32 %v758, %v787
      %789 = vdwg.mxu0
      %790 = vmatpush.msra.mxu0 0.0
      %791 = vmatpush.msra.mxu0 0.0
      %792 = vmatpush.msra.mxu0 0.0
      %793 = vmatpush.msra.mxu0 0.0
      %794 = vmatpush.msra.mxu0 0.0
      %795 = vmatpush.msra.mxu0 0.0
      %796 = vmatpush.msra.mxu0 0.0
      %797 = vmatpush.msra.mxu0 %v739
      %798 = vmatpush.msra.mxu0 %v688
      %799 = vmatpush.msra.mxu0 %v638
      %800 = vmatpush.msra.mxu0 %v586
      %801 = vmatpush.msra.mxu0 %v329
      %802 = vmatpush.msra.mxu0 %v536
      %803 = vmatpush.msra.mxu0 %v486
      %804 = vmatpush.msra.mxu0 %v434
      %805 = vmatpush.msra.mxu0 %v384
      %806 = vmatmul.f32.gmra.mxu0 %v762
      %v807 = vpop.f32.mrf.mxu0
      %v808 = vadd.f32 %v753, %v807
      %809 = vmatmul.f32.gmra.mxu0 %v765
      %v810 = vpop.f32.mrf.mxu0
      %v811 = vadd.f32 %v758, %v810
      %812 = vdwg.mxu0
      %813 = vmatpush.msra.mxu0 0.0
      %814 = vmatpush.msra.mxu0 0.0
      %815 = vmatpush.msra.mxu0 0.0
      %816 = vmatpush.msra.mxu0 0.0
      %817 = vmatpush.msra.mxu0 0.0
      %818 = vmatpush.msra.mxu0 0.0
      %819 = vmatpush.msra.mxu0 0.0
      %820 = vmatpush.msra.mxu0 %v740
      %821 = vmatpush.msra.mxu0 %v689
      %822 = vmatpush.msra.mxu0 %v639
      %823 = vmatpush.msra.mxu0 %v587
      %824 = vmatpush.msra.mxu0 %v330
      %825 = vmatpush.msra.mxu0 %v537
      %826 = vmatpush.msra.mxu0 %v487
      %827 = vmatpush.msra.mxu0 %v435
      %828 = vmatpush.msra.mxu0 %v385
      %829 = vmatmul.f32.gmra.mxu0 %v762
      %v830 = vpop.f32.mrf.mxu0
      %v831 = vadd.f32 %v753, %v830
      %832 = vmatmul.f32.gmra.mxu0 %v765
      %v833 = vpop.f32.mrf.mxu0
      %v834 = vadd.f32 %v758, %v833
      %835 = vdwg.mxu0
      %836 = vmatpush.msra.mxu0 0.0
      %837 = vmatpush.msra.mxu0 0.0
      %838 = vmatpush.msra.mxu0 0.0
      %839 = vmatpush.msra.mxu0 0.0
      %840 = vmatpush.msra.mxu0 0.0
      %841 = vmatpush.msra.mxu0 0.0
      %842 = vmatpush.msra.mxu0 0.0
      %843 = vmatpush.msra.mxu0 %v741
      %844 = vmatpush.msra.mxu0 %v690
      %845 = vmatpush.msra.mxu0 %v640
      %846 = vmatpush.msra.mxu0 %v588
      %847 = vmatpush.msra.mxu0 %v331
      %848 = vmatpush.msra.mxu0 %v538
      %849 = vmatpush.msra.mxu0 %v488
      %850 = vmatpush.msra.mxu0 %v436
      %851 = vmatpush.msra.mxu0 %v386
      %852 = vmatmul.f32.gmra.mxu0 %v762
      %v853 = vpop.f32.mrf.mxu0
      %v854 = vadd.f32 %v753, %v853
      %855 = vmatmul.f32.gmra.mxu0 %v765
      %v856 = vpop.f32.mrf.mxu0
      %v857 = vadd.f32 %v758, %v856
      %858 = vdwg.mxu0
      %859 = vmatpush.msra.mxu0 0.0
      %860 = vmatpush.msra.mxu0 0.0
      %861 = vmatpush.msra.mxu0 0.0
      %862 = vmatpush.msra.mxu0 0.0
      %863 = vmatpush.msra.mxu0 0.0
      %864 = vmatpush.msra.mxu0 0.0
      %865 = vmatpush.msra.mxu0 0.0
      %866 = vmatpush.msra.mxu0 %v742
      %867 = vmatpush.msra.mxu0 %v691
      %868 = vmatpush.msra.mxu0 %v641
      %869 = vmatpush.msra.mxu0 %v589
      %870 = vmatpush.msra.mxu0 %v332
      %871 = vmatpush.msra.mxu0 %v539
      %872 = vmatpush.msra.mxu0 %v489
      %873 = vmatpush.msra.mxu0 %v437
      %874 = vmatpush.msra.mxu0 %v387
      %875 = vmatmul.f32.gmra.mxu0 %v762
      %v876 = vpop.f32.mrf.mxu0
      %v877 = vadd.f32 %v753, %v876
      %878 = vmatmul.f32.gmra.mxu0 %v765
      %v879 = vpop.f32.mrf.mxu0
      %v880 = vadd.f32 %v758, %v879
      %881 = vdwg.mxu0
      %882 = vmatpush.msra.mxu0 0.0
      %883 = vmatpush.msra.mxu0 0.0
      %884 = vmatpush.msra.mxu0 0.0
      %885 = vmatpush.msra.mxu0 0.0
      %886 = vmatpush.msra.mxu0 0.0
      %887 = vmatpush.msra.mxu0 0.0
      %888 = vmatpush.msra.mxu0 0.0
      %889 = vmatpush.msra.mxu0 %v743
      %890 = vmatpush.msra.mxu0 %v692
      %891 = vmatpush.msra.mxu0 %v642
      %892 = vmatpush.msra.mxu0 %v590
      %893 = vmatpush.msra.mxu0 %v333
      %894 = vmatpush.msra.mxu0 %v540
      %895 = vmatpush.msra.mxu0 %v490
      %896 = vmatpush.msra.mxu0 %v438
      %897 = vmatpush.msra.mxu0 %v388
      %898 = vmatmul.f32.gmra.mxu0 %v762
      %v899 = vpop.f32.mrf.mxu0
      %v900 = vadd.f32 %v753, %v899
      %901 = vmatmul.f32.gmra.mxu0 %v765
      %v902 = vpop.f32.mrf.mxu0
      %v903 = vadd.f32 %v758, %v902
      %904 = vdwg.mxu0
      %905 = vmatpush.msra.mxu0 0.0
      %906 = vmatpush.msra.mxu0 0.0
      %907 = vmatpush.msra.mxu0 0.0
      %908 = vmatpush.msra.mxu0 0.0
      %909 = vmatpush.msra.mxu0 0.0
      %910 = vmatpush.msra.mxu0 0.0
      %911 = vmatpush.msra.mxu0 0.0
      %912 = vmatpush.msra.mxu0 %v744
      %913 = vmatpush.msra.mxu0 %v693
      %914 = vmatpush.msra.mxu0 %v643
      %915 = vmatpush.msra.mxu0 %v591
      %916 = vmatpush.msra.mxu0 %v334
      %917 = vmatpush.msra.mxu0 %v541
      %918 = vmatpush.msra.mxu0 %v491
      %919 = vmatpush.msra.mxu0 %v439
      %920 = vmatpush.msra.mxu0 %v389
      %921 = vmatmul.f32.gmra.mxu0 %v762
      %v922 = vpop.f32.mrf.mxu0
      %v923 = vadd.f32 %v753, %v922
      %924 = vmatmul.f32.gmra.mxu0 %v765
      %v925 = vpop.f32.mrf.mxu0
      %v926 = vadd.f32 %v758, %v925
      %927 = vdwg.mxu0
      %928 = vmatpush.msra.mxu0 0.0
      %929 = vmatpush.msra.mxu0 0.0
      %930 = vmatpush.msra.mxu0 0.0
      %931 = vmatpush.msra.mxu0 0.0
      %932 = vmatpush.msra.mxu0 0.0
      %933 = vmatpush.msra.mxu0 0.0
      %934 = vmatpush.msra.mxu0 0.0
      %935 = vmatpush.msra.mxu0 %v745
      %936 = vmatpush.msra.mxu0 %v694
      %937 = vmatpush.msra.mxu0 %v644
      %938 = vmatpush.msra.mxu0 %v592
      %939 = vmatpush.msra.mxu0 %v335
      %940 = vmatpush.msra.mxu0 %v542
      %941 = vmatpush.msra.mxu0 %v492
      %942 = vmatpush.msra.mxu0 %v440
      %943 = vmatpush.msra.mxu0 %v390
      %944 = vmatmul.f32.gmra.mxu0 %v762
      %v945 = vpop.f32.mrf.mxu0
      %v946 = vadd.f32 %v753, %v945
      %947 = vmatmul.f32.gmra.mxu0 %v765
      %v948 = vpop.f32.mrf.mxu0
      %v949 = vadd.f32 %v758, %v948
      %950 = vdwg.mxu0
      %v951 = vmax.f32 %v785, 0.0
      %v952 = vmax.f32 %v808, 0.0
      %v953 = vmax.f32 %v831, 0.0
      %v954 = vmax.f32 %v854, 0.0
      %v955 = vmax.f32 %v877, 0.0
      %v956 = vmax.f32 %v900, 0.0
      %v957 = vmax.f32 %v923, 0.0
      %v958 = vmax.f32 %v946, 0.0
      %v959 = vmax.f32 %v788, 0.0
      %v960 = vmax.f32 %v811, 0.0
      %v961 = vmax.f32 %v834, 0.0
      %v962 = vmax.f32 %v857, 0.0
      %v963 = vmax.f32 %v880, 0.0
      %v964 = vmax.f32 %v903, 0.0
      %v965 = vmax.f32 %v926, 0.0
      %v966 = vmax.f32 %v949, 0.0
      %967 = vrot.lane.b32.xlu0 %v951, 33
      %v968 = vpop.permute.xlu0 %967
      %969 = vrot.lane.b32.xlu0 %v959, 33
      %v970 = vpop.permute.xlu0 %969
      %971 = vrot.lane.b32.xlu0 %v952, 33
      %v972 = vpop.permute.xlu0 %971
      %973 = vrot.lane.b32.xlu0 %v960, 33
      %v974 = vpop.permute.xlu0 %973
      %975 = vrot.lane.b32.xlu0 %v953, 33
      %v976 = vpop.permute.xlu0 %975
      %977 = vrot.lane.b32.xlu0 %v961, 33
      %v978 = vpop.permute.xlu0 %977
      %979 = vrot.lane.b32.xlu0 %v954, 33
      %v980 = vpop.permute.xlu0 %979
      %981 = vrot.lane.b32.xlu0 %v962, 33
      %v982 = vpop.permute.xlu0 %981
      %983 = vrot.lane.b32.xlu0 %v955, 33
      %v984 = vpop.permute.xlu0 %983
      %985 = vrot.lane.b32.xlu0 %v963, 33
      %v986 = vpop.permute.xlu0 %985
      %987 = vrot.lane.b32.xlu0 %v956, 33
      %v988 = vpop.permute.xlu0 %987
      %989 = vrot.lane.b32.xlu0 %v964, 33
      %v990 = vpop.permute.xlu0 %989
      %991 = vrot.lane.b32.xlu0 %v957, 33
      %v992 = vpop.permute.xlu0 %991
      %993 = vrot.lane.b32.xlu0 %v965, 33
      %v994 = vpop.permute.xlu0 %993
      %995 = vrot.lane.b32.xlu0 %v958, 33
      %v996 = vpop.permute.xlu0 %995
      %997 = vrot.lane.b32.xlu0 %v966, 33
      %v998 = vpop.permute.xlu0 %997
      %v999 = vsel %vm354, %v992, %v996
      %v1000 = vsel %vm354, %v994, %v998
      %v1001 = vsel %vm354, %v988, %v992
      %v1002 = vsel %vm354, %v990, %v994
      %v1003 = vsel %vm354, %v984, %v988
      %v1004 = vsel %vm354, %v986, %v990
      %v1005 = vsel %vm354, %v980, %v984
      %v1006 = vsel %vm354, %v982, %v986
      %v1007 = vsel %vm354, %v976, %v980
      %v1008 = vsel %vm354, %v978, %v982
      %v1009 = vsel %vm354, %v972, %v976
      %v1010 = vsel %vm354, %v974, %v978
      %v1011 = vsel %vm354, %v968, %v972
      %v1012 = vsel %vm354, %v970, %v974
      %v1013 = vsel %vm354, %v996, %v968
      %v1014 = vsel %vm354, %v998, %v970
      %v1015 = vsel %vm375, %v1013, 0.0
      %v1016 = vsel %vm376, %v1011, 0.0
      %v1017 = vsel %vm377, %v1009, 0.0
      %v1018 = vsel %vm378, %v1007, 0.0
      %v1019 = vsel %vm379, %v1005, 0.0
      %v1020 = vsel %vm380, %v1003, 0.0
      %v1021 = vsel %vm381, %v1001, 0.0
      %v1022 = vsel %vm382, %v999, 0.0
      %v1023 = vsel %vm375, %v1014, 0.0
      %v1024 = vsel %vm376, %v1012, 0.0
      %v1025 = vsel %vm377, %v1010, 0.0
      %v1026 = vsel %vm378, %v1008, 0.0
      %v1027 = vsel %vm379, %v1006, 0.0
      %v1028 = vsel %vm380, %v1004, 0.0
      %v1029 = vsel %vm381, %v1002, 0.0
      %v1030 = vsel %vm382, %v1000, 0.0
      %1031 = vrot.lane.b32.xlu0 %v951, 32
      %v1032 = vpop.permute.xlu0 %1031
      %1033 = vrot.lane.b32.xlu0 %v959, 32
      %v1034 = vpop.permute.xlu0 %1033
      %1035 = vrot.lane.b32.xlu0 %v952, 32
      %v1036 = vpop.permute.xlu0 %1035
      %1037 = vrot.lane.b32.xlu0 %v960, 32
      %v1038 = vpop.permute.xlu0 %1037
      %1039 = vrot.lane.b32.xlu0 %v953, 32
      %v1040 = vpop.permute.xlu0 %1039
      %1041 = vrot.lane.b32.xlu0 %v961, 32
      %v1042 = vpop.permute.xlu0 %1041
      %1043 = vrot.lane.b32.xlu0 %v954, 32
      %v1044 = vpop.permute.xlu0 %1043
      %1045 = vrot.lane.b32.xlu0 %v962, 32
      %v1046 = vpop.permute.xlu0 %1045
      %1047 = vrot.lane.b32.xlu0 %v955, 32
      %v1048 = vpop.permute.xlu0 %1047
      %1049 = vrot.lane.b32.xlu0 %v963, 32
      %v1050 = vpop.permute.xlu0 %1049
      %1051 = vrot.lane.b32.xlu0 %v956, 32
      %v1052 = vpop.permute.xlu0 %1051
      %1053 = vrot.lane.b32.xlu0 %v964, 32
      %v1054 = vpop.permute.xlu0 %1053
      %1055 = vrot.lane.b32.xlu0 %v957, 32
      %v1056 = vpop.permute.xlu0 %1055
      %1057 = vrot.lane.b32.xlu0 %v965, 32
      %v1058 = vpop.permute.xlu0 %1057
      %1059 = vrot.lane.b32.xlu0 %v958, 32
      %v1060 = vpop.permute.xlu0 %1059
      %1061 = vrot.lane.b32.xlu0 %v966, 32
      %v1062 = vpop.permute.xlu0 %1061
      %v1063 = vsel %vm407, %v1056, %v1060
      %v1064 = vsel %vm407, %v1058, %v1062
      %v1065 = vsel %vm407, %v1052, %v1056
      %v1066 = vsel %vm407, %v1054, %v1058
      %v1067 = vsel %vm407, %v1048, %v1052
      %v1068 = vsel %vm407, %v1050, %v1054
      %v1069 = vsel %vm407, %v1044, %v1048
      %v1070 = vsel %vm407, %v1046, %v1050
      %v1071 = vsel %vm407, %v1040, %v1044
      %v1072 = vsel %vm407, %v1042, %v1046
      %v1073 = vsel %vm407, %v1036, %v1040
      %v1074 = vsel %vm407, %v1038, %v1042
      %v1075 = vsel %vm407, %v1032, %v1036
      %v1076 = vsel %vm407, %v1034, %v1038
      %v1077 = vsel %vm407, %v1060, %v1032
      %v1078 = vsel %vm407, %v1062, %v1034
      %v1079 = vsel %vm425, %v1077, 0.0
      %v1080 = vsel %vm426, %v1075, 0.0
      %v1081 = vsel %vm427, %v1073, 0.0
      %v1082 = vsel %vm428, %v1071, 0.0
      %v1083 = vsel %vm429, %v1069, 0.0
      %v1084 = vsel %vm430, %v1067, 0.0
      %v1085 = vsel %vm431, %v1065, 0.0
      %v1086 = vsel %vm432, %v1063, 0.0
      %v1087 = vsel %vm425, %v1078, 0.0
      %v1088 = vsel %vm426, %v1076, 0.0
      %v1089 = vsel %vm427, %v1074, 0.0
      %v1090 = vsel %vm428, %v1072, 0.0
      %v1091 = vsel %vm429, %v1070, 0.0
      %v1092 = vsel %vm430, %v1068, 0.0
      %v1093 = vsel %vm431, %v1066, 0.0
      %v1094 = vsel %vm432, %v1064, 0.0
      %1095 = vrot.lane.b32.xlu0 %v951, 31
      %v1096 = vpop.permute.xlu0 %1095
      %1097 = vrot.lane.b32.xlu0 %v959, 31
      %v1098 = vpop.permute.xlu0 %1097
      %1099 = vrot.lane.b32.xlu0 %v952, 31
      %v1100 = vpop.permute.xlu0 %1099
      %1101 = vrot.lane.b32.xlu0 %v960, 31
      %v1102 = vpop.permute.xlu0 %1101
      %1103 = vrot.lane.b32.xlu0 %v953, 31
      %v1104 = vpop.permute.xlu0 %1103
      %1105 = vrot.lane.b32.xlu0 %v961, 31
      %v1106 = vpop.permute.xlu0 %1105
      %1107 = vrot.lane.b32.xlu0 %v954, 31
      %v1108 = vpop.permute.xlu0 %1107
      %1109 = vrot.lane.b32.xlu0 %v962, 31
      %v1110 = vpop.permute.xlu0 %1109
      %1111 = vrot.lane.b32.xlu0 %v955, 31
      %v1112 = vpop.permute.xlu0 %1111
      %1113 = vrot.lane.b32.xlu0 %v963, 31
      %v1114 = vpop.permute.xlu0 %1113
      %1115 = vrot.lane.b32.xlu0 %v956, 31
      %v1116 = vpop.permute.xlu0 %1115
      %1117 = vrot.lane.b32.xlu0 %v964, 31
      %v1118 = vpop.permute.xlu0 %1117
      %1119 = vrot.lane.b32.xlu0 %v957, 31
      %v1120 = vpop.permute.xlu0 %1119
      %1121 = vrot.lane.b32.xlu0 %v965, 31
      %v1122 = vpop.permute.xlu0 %1121
      %1123 = vrot.lane.b32.xlu0 %v958, 31
      %v1124 = vpop.permute.xlu0 %1123
      %1125 = vrot.lane.b32.xlu0 %v966, 31
      %v1126 = vpop.permute.xlu0 %1125
      %v1127 = vsel %vm457, %v1120, %v1124
      %v1128 = vsel %vm457, %v1122, %v1126
      %v1129 = vsel %vm457, %v1116, %v1120
      %v1130 = vsel %vm457, %v1118, %v1122
      %v1131 = vsel %vm457, %v1112, %v1116
      %v1132 = vsel %vm457, %v1114, %v1118
      %v1133 = vsel %vm457, %v1108, %v1112
      %v1134 = vsel %vm457, %v1110, %v1114
      %v1135 = vsel %vm457, %v1104, %v1108
      %v1136 = vsel %vm457, %v1106, %v1110
      %v1137 = vsel %vm457, %v1100, %v1104
      %v1138 = vsel %vm457, %v1102, %v1106
      %v1139 = vsel %vm457, %v1096, %v1100
      %v1140 = vsel %vm457, %v1098, %v1102
      %v1141 = vsel %vm457, %v1124, %v1096
      %v1142 = vsel %vm457, %v1126, %v1098
      %v1143 = vsel %vm477, %v1141, 0.0
      %v1144 = vsel %vm478, %v1139, 0.0
      %v1145 = vsel %vm479, %v1137, 0.0
      %v1146 = vsel %vm480, %v1135, 0.0
      %v1147 = vsel %vm481, %v1133, 0.0
      %v1148 = vsel %vm482, %v1131, 0.0
      %v1149 = vsel %vm483, %v1129, 0.0
      %v1150 = vsel %vm484, %v1127, 0.0
      %v1151 = vsel %vm477, %v1142, 0.0
      %v1152 = vsel %vm478, %v1140, 0.0
      %v1153 = vsel %vm479, %v1138, 0.0
      %v1154 = vsel %vm480, %v1136, 0.0
      %v1155 = vsel %vm481, %v1134, 0.0
      %v1156 = vsel %vm482, %v1132, 0.0
      %v1157 = vsel %vm483, %v1130, 0.0
      %v1158 = vsel %vm484, %v1128, 0.0
      %1159 = vrot.lane.b32.xlu0 %v951, 1
      %v1160 = vpop.permute.xlu0 %1159
      %1161 = vrot.lane.b32.xlu0 %v959, 1
      %v1162 = vpop.permute.xlu0 %1161
      %1163 = vrot.lane.b32.xlu0 %v952, 1
      %v1164 = vpop.permute.xlu0 %1163
      %1165 = vrot.lane.b32.xlu0 %v960, 1
      %v1166 = vpop.permute.xlu0 %1165
      %1167 = vrot.lane.b32.xlu0 %v953, 1
      %v1168 = vpop.permute.xlu0 %1167
      %1169 = vrot.lane.b32.xlu0 %v961, 1
      %v1170 = vpop.permute.xlu0 %1169
      %1171 = vrot.lane.b32.xlu0 %v954, 1
      %v1172 = vpop.permute.xlu0 %1171
      %1173 = vrot.lane.b32.xlu0 %v962, 1
      %v1174 = vpop.permute.xlu0 %1173
      %1175 = vrot.lane.b32.xlu0 %v955, 1
      %v1176 = vpop.permute.xlu0 %1175
      %1177 = vrot.lane.b32.xlu0 %v963, 1
      %v1178 = vpop.permute.xlu0 %1177
      %1179 = vrot.lane.b32.xlu0 %v956, 1
      %v1180 = vpop.permute.xlu0 %1179
      %1181 = vrot.lane.b32.xlu0 %v964, 1
      %v1182 = vpop.permute.xlu0 %1181
      %1183 = vrot.lane.b32.xlu0 %v957, 1
      %v1184 = vpop.permute.xlu0 %1183
      %1185 = vrot.lane.b32.xlu0 %v965, 1
      %v1186 = vpop.permute.xlu0 %1185
      %1187 = vrot.lane.b32.xlu0 %v958, 1
      %v1188 = vpop.permute.xlu0 %1187
      %1189 = vrot.lane.b32.xlu0 %v966, 1
      %v1190 = vpop.permute.xlu0 %1189
      %v1191 = vsel %vm509, %v1184, %v1188
      %v1192 = vsel %vm509, %v1186, %v1190
      %v1193 = vsel %vm509, %v1180, %v1184
      %v1194 = vsel %vm509, %v1182, %v1186
      %v1195 = vsel %vm509, %v1176, %v1180
      %v1196 = vsel %vm509, %v1178, %v1182
      %v1197 = vsel %vm509, %v1172, %v1176
      %v1198 = vsel %vm509, %v1174, %v1178
      %v1199 = vsel %vm509, %v1168, %v1172
      %v1200 = vsel %vm509, %v1170, %v1174
      %v1201 = vsel %vm509, %v1164, %v1168
      %v1202 = vsel %vm509, %v1166, %v1170
      %v1203 = vsel %vm509, %v1160, %v1164
      %v1204 = vsel %vm509, %v1162, %v1166
      %v1205 = vsel %vm509, %v1188, %v1160
      %v1206 = vsel %vm509, %v1190, %v1162
      %v1207 = vsel %vm527, %v1205, 0.0
      %v1208 = vsel %vm528, %v1203, 0.0
      %v1209 = vsel %vm529, %v1201, 0.0
      %v1210 = vsel %vm530, %v1199, 0.0
      %v1211 = vsel %vm531, %v1197, 0.0
      %v1212 = vsel %vm532, %v1195, 0.0
      %v1213 = vsel %vm533, %v1193, 0.0
      %v1214 = vsel %vm534, %v1191, 0.0
      %v1215 = vsel %vm527, %v1206, 0.0
      %v1216 = vsel %vm528, %v1204, 0.0
      %v1217 = vsel %vm529, %v1202, 0.0
      %v1218 = vsel %vm530, %v1200, 0.0
      %v1219 = vsel %vm531, %v1198, 0.0
      %v1220 = vsel %vm532, %v1196, 0.0
      %v1221 = vsel %vm533, %v1194, 0.0
      %v1222 = vsel %vm534, %v1192, 0.0
      %1223 = vrot.lane.b32.xlu0 %v951, 127
      %v1224 = vpop.permute.xlu0 %1223
      %1225 = vrot.lane.b32.xlu0 %v959, 127
      %v1226 = vpop.permute.xlu0 %1225
      %1227 = vrot.lane.b32.xlu0 %v952, 127
      %v1228 = vpop.permute.xlu0 %1227
      %1229 = vrot.lane.b32.xlu0 %v960, 127
      %v1230 = vpop.permute.xlu0 %1229
      %1231 = vrot.lane.b32.xlu0 %v953, 127
      %v1232 = vpop.permute.xlu0 %1231
      %1233 = vrot.lane.b32.xlu0 %v961, 127
      %v1234 = vpop.permute.xlu0 %1233
      %1235 = vrot.lane.b32.xlu0 %v954, 127
      %v1236 = vpop.permute.xlu0 %1235
      %1237 = vrot.lane.b32.xlu0 %v962, 127
      %v1238 = vpop.permute.xlu0 %1237
      %1239 = vrot.lane.b32.xlu0 %v955, 127
      %v1240 = vpop.permute.xlu0 %1239
      %1241 = vrot.lane.b32.xlu0 %v963, 127
      %v1242 = vpop.permute.xlu0 %1241
      %1243 = vrot.lane.b32.xlu0 %v956, 127
      %v1244 = vpop.permute.xlu0 %1243
      %1245 = vrot.lane.b32.xlu0 %v964, 127
      %v1246 = vpop.permute.xlu0 %1245
      %1247 = vrot.lane.b32.xlu0 %v957, 127
      %v1248 = vpop.permute.xlu0 %1247
      %1249 = vrot.lane.b32.xlu0 %v965, 127
      %v1250 = vpop.permute.xlu0 %1249
      %1251 = vrot.lane.b32.xlu0 %v958, 127
      %v1252 = vpop.permute.xlu0 %1251
      %1253 = vrot.lane.b32.xlu0 %v966, 127
      %v1254 = vpop.permute.xlu0 %1253
      %v1255 = vsel %vm559, %v1248, %v1252
      %v1256 = vsel %vm559, %v1250, %v1254
      %v1257 = vsel %vm559, %v1244, %v1248
      %v1258 = vsel %vm559, %v1246, %v1250
      %v1259 = vsel %vm559, %v1240, %v1244
      %v1260 = vsel %vm559, %v1242, %v1246
      %v1261 = vsel %vm559, %v1236, %v1240
      %v1262 = vsel %vm559, %v1238, %v1242
      %v1263 = vsel %vm559, %v1232, %v1236
      %v1264 = vsel %vm559, %v1234, %v1238
      %v1265 = vsel %vm559, %v1228, %v1232
      %v1266 = vsel %vm559, %v1230, %v1234
      %v1267 = vsel %vm559, %v1224, %v1228
      %v1268 = vsel %vm559, %v1226, %v1230
      %v1269 = vsel %vm559, %v1252, %v1224
      %v1270 = vsel %vm559, %v1254, %v1226
      %v1271 = vsel %vm577, %v1267, 0.0
      %v1272 = vsel %vm578, %v1265, 0.0
      %v1273 = vsel %vm579, %v1263, 0.0
      %v1274 = vsel %vm580, %v1261, 0.0
      %v1275 = vsel %vm581, %v1259, 0.0
      %v1276 = vsel %vm582, %v1257, 0.0
      %v1277 = vsel %vm583, %v1255, 0.0
      %v1278 = vsel %vm584, %v1269, 0.0
      %v1279 = vsel %vm577, %v1268, 0.0
      %v1280 = vsel %vm578, %v1266, 0.0
      %v1281 = vsel %vm579, %v1264, 0.0
      %v1282 = vsel %vm580, %v1262, 0.0
      %v1283 = vsel %vm581, %v1260, 0.0
      %v1284 = vsel %vm582, %v1258, 0.0
      %v1285 = vsel %vm583, %v1256, 0.0
      %v1286 = vsel %vm584, %v1270, 0.0
      %1287 = vrot.lane.b32.xlu0 %v951, 97
      %v1288 = vpop.permute.xlu0 %1287
      %1289 = vrot.lane.b32.xlu0 %v959, 97
      %v1290 = vpop.permute.xlu0 %1289
      %1291 = vrot.lane.b32.xlu0 %v952, 97
      %v1292 = vpop.permute.xlu0 %1291
      %1293 = vrot.lane.b32.xlu0 %v960, 97
      %v1294 = vpop.permute.xlu0 %1293
      %1295 = vrot.lane.b32.xlu0 %v953, 97
      %v1296 = vpop.permute.xlu0 %1295
      %1297 = vrot.lane.b32.xlu0 %v961, 97
      %v1298 = vpop.permute.xlu0 %1297
      %1299 = vrot.lane.b32.xlu0 %v954, 97
      %v1300 = vpop.permute.xlu0 %1299
      %1301 = vrot.lane.b32.xlu0 %v962, 97
      %v1302 = vpop.permute.xlu0 %1301
      %1303 = vrot.lane.b32.xlu0 %v955, 97
      %v1304 = vpop.permute.xlu0 %1303
      %1305 = vrot.lane.b32.xlu0 %v963, 97
      %v1306 = vpop.permute.xlu0 %1305
      %1307 = vrot.lane.b32.xlu0 %v956, 97
      %v1308 = vpop.permute.xlu0 %1307
      %1309 = vrot.lane.b32.xlu0 %v964, 97
      %v1310 = vpop.permute.xlu0 %1309
      %1311 = vrot.lane.b32.xlu0 %v957, 97
      %v1312 = vpop.permute.xlu0 %1311
      %1313 = vrot.lane.b32.xlu0 %v965, 97
      %v1314 = vpop.permute.xlu0 %1313
      %1315 = vrot.lane.b32.xlu0 %v958, 97
      %v1316 = vpop.permute.xlu0 %1315
      %1317 = vrot.lane.b32.xlu0 %v966, 97
      %v1318 = vpop.permute.xlu0 %1317
      %v1319 = vsel %vm609, %v1312, %v1316
      %v1320 = vsel %vm609, %v1314, %v1318
      %v1321 = vsel %vm609, %v1308, %v1312
      %v1322 = vsel %vm609, %v1310, %v1314
      %v1323 = vsel %vm609, %v1304, %v1308
      %v1324 = vsel %vm609, %v1306, %v1310
      %v1325 = vsel %vm609, %v1300, %v1304
      %v1326 = vsel %vm609, %v1302, %v1306
      %v1327 = vsel %vm609, %v1296, %v1300
      %v1328 = vsel %vm609, %v1298, %v1302
      %v1329 = vsel %vm609, %v1292, %v1296
      %v1330 = vsel %vm609, %v1294, %v1298
      %v1331 = vsel %vm609, %v1288, %v1292
      %v1332 = vsel %vm609, %v1290, %v1294
      %v1333 = vsel %vm609, %v1316, %v1288
      %v1334 = vsel %vm609, %v1318, %v1290
      %v1335 = vsel %vm629, %v1331, 0.0
      %v1336 = vsel %vm630, %v1329, 0.0
      %v1337 = vsel %vm631, %v1327, 0.0
      %v1338 = vsel %vm632, %v1325, 0.0
      %v1339 = vsel %vm633, %v1323, 0.0
      %v1340 = vsel %vm634, %v1321, 0.0
      %v1341 = vsel %vm635, %v1319, 0.0
      %v1342 = vsel %vm636, %v1333, 0.0
      %v1343 = vsel %vm629, %v1332, 0.0
      %v1344 = vsel %vm630, %v1330, 0.0
      %v1345 = vsel %vm631, %v1328, 0.0
      %v1346 = vsel %vm632, %v1326, 0.0
      %v1347 = vsel %vm633, %v1324, 0.0
      %v1348 = vsel %vm634, %v1322, 0.0
      %v1349 = vsel %vm635, %v1320, 0.0
      %v1350 = vsel %vm636, %v1334, 0.0
      %1351 = vrot.lane.b32.xlu0 %v951, 96
      %v1352 = vpop.permute.xlu0 %1351
      %1353 = vrot.lane.b32.xlu0 %v959, 96
      %v1354 = vpop.permute.xlu0 %1353
      %1355 = vrot.lane.b32.xlu0 %v952, 96
      %v1356 = vpop.permute.xlu0 %1355
      %1357 = vrot.lane.b32.xlu0 %v960, 96
      %v1358 = vpop.permute.xlu0 %1357
      %1359 = vrot.lane.b32.xlu0 %v953, 96
      %v1360 = vpop.permute.xlu0 %1359
      %1361 = vrot.lane.b32.xlu0 %v961, 96
      %v1362 = vpop.permute.xlu0 %1361
      %1363 = vrot.lane.b32.xlu0 %v954, 96
      %v1364 = vpop.permute.xlu0 %1363
      %1365 = vrot.lane.b32.xlu0 %v962, 96
      %v1366 = vpop.permute.xlu0 %1365
      %1367 = vrot.lane.b32.xlu0 %v955, 96
      %v1368 = vpop.permute.xlu0 %1367
      %1369 = vrot.lane.b32.xlu0 %v963, 96
      %v1370 = vpop.permute.xlu0 %1369
      %1371 = vrot.lane.b32.xlu0 %v956, 96
      %v1372 = vpop.permute.xlu0 %1371
      %1373 = vrot.lane.b32.xlu0 %v964, 96
      %v1374 = vpop.permute.xlu0 %1373
      %1375 = vrot.lane.b32.xlu0 %v957, 96
      %v1376 = vpop.permute.xlu0 %1375
      %1377 = vrot.lane.b32.xlu0 %v965, 96
      %v1378 = vpop.permute.xlu0 %1377
      %1379 = vrot.lane.b32.xlu0 %v958, 96
      %v1380 = vpop.permute.xlu0 %1379
      %1381 = vrot.lane.b32.xlu0 %v966, 96
      %v1382 = vpop.permute.xlu0 %1381
      %v1383 = vsel %vm661, %v1376, %v1380
      %v1384 = vsel %vm661, %v1378, %v1382
      %v1385 = vsel %vm661, %v1372, %v1376
      %v1386 = vsel %vm661, %v1374, %v1378
      %v1387 = vsel %vm661, %v1368, %v1372
      %v1388 = vsel %vm661, %v1370, %v1374
      %v1389 = vsel %vm661, %v1364, %v1368
      %v1390 = vsel %vm661, %v1366, %v1370
      %v1391 = vsel %vm661, %v1360, %v1364
      %v1392 = vsel %vm661, %v1362, %v1366
      %v1393 = vsel %vm661, %v1356, %v1360
      %v1394 = vsel %vm661, %v1358, %v1362
      %v1395 = vsel %vm661, %v1352, %v1356
      %v1396 = vsel %vm661, %v1354, %v1358
      %v1397 = vsel %vm661, %v1380, %v1352
      %v1398 = vsel %vm661, %v1382, %v1354
      %v1399 = vsel %vm679, %v1395, 0.0
      %v1400 = vsel %vm680, %v1393, 0.0
      %v1401 = vsel %vm681, %v1391, 0.0
      %v1402 = vsel %vm682, %v1389, 0.0
      %v1403 = vsel %vm683, %v1387, 0.0
      %v1404 = vsel %vm684, %v1385, 0.0
      %v1405 = vsel %vm685, %v1383, 0.0
      %v1406 = vsel %vm686, %v1397, 0.0
      %v1407 = vsel %vm679, %v1396, 0.0
      %v1408 = vsel %vm680, %v1394, 0.0
      %v1409 = vsel %vm681, %v1392, 0.0
      %v1410 = vsel %vm682, %v1390, 0.0
      %v1411 = vsel %vm683, %v1388, 0.0
      %v1412 = vsel %vm684, %v1386, 0.0
      %v1413 = vsel %vm685, %v1384, 0.0
      %v1414 = vsel %vm686, %v1398, 0.0
      %1415 = vrot.lane.b32.xlu0 %v951, 95
      %v1416 = vpop.permute.xlu0 %1415
      %1417 = vrot.lane.b32.xlu0 %v959, 95
      %v1418 = vpop.permute.xlu0 %1417
      %1419 = vrot.lane.b32.xlu0 %v952, 95
      %v1420 = vpop.permute.xlu0 %1419
      %1421 = vrot.lane.b32.xlu0 %v960, 95
      %v1422 = vpop.permute.xlu0 %1421
      %1423 = vrot.lane.b32.xlu0 %v953, 95
      %v1424 = vpop.permute.xlu0 %1423
      %1425 = vrot.lane.b32.xlu0 %v961, 95
      %v1426 = vpop.permute.xlu0 %1425
      %1427 = vrot.lane.b32.xlu0 %v954, 95
      %v1428 = vpop.permute.xlu0 %1427
      %1429 = vrot.lane.b32.xlu0 %v962, 95
      %v1430 = vpop.permute.xlu0 %1429
      %1431 = vrot.lane.b32.xlu0 %v955, 95
      %v1432 = vpop.permute.xlu0 %1431
      %1433 = vrot.lane.b32.xlu0 %v963, 95
      %v1434 = vpop.permute.xlu0 %1433
      %1435 = vrot.lane.b32.xlu0 %v956, 95
      %v1436 = vpop.permute.xlu0 %1435
      %1437 = vrot.lane.b32.xlu0 %v964, 95
      %v1438 = vpop.permute.xlu0 %1437
      %1439 = vrot.lane.b32.xlu0 %v957, 95
      %v1440 = vpop.permute.xlu0 %1439
      %1441 = vrot.lane.b32.xlu0 %v965, 95
      %v1442 = vpop.permute.xlu0 %1441
      %1443 = vrot.lane.b32.xlu0 %v958, 95
      %v1444 = vpop.permute.xlu0 %1443
      %1445 = vrot.lane.b32.xlu0 %v966, 95
      %v1446 = vpop.permute.xlu0 %1445
      %v1447 = vsel %vm711, %v1440, %v1444
      %v1448 = vsel %vm711, %v1442, %v1446
      %v1449 = vsel %vm711, %v1436, %v1440
      %v1450 = vsel %vm711, %v1438, %v1442
      %v1451 = vsel %vm711, %v1432, %v1436
      %v1452 = vsel %vm711, %v1434, %v1438
      %v1453 = vsel %vm711, %v1428, %v1432
      %v1454 = vsel %vm711, %v1430, %v1434
      %v1455 = vsel %vm711, %v1424, %v1428
      %v1456 = vsel %vm711, %v1426, %v1430
      %v1457 = vsel %vm711, %v1420, %v1424
      %v1458 = vsel %vm711, %v1422, %v1426
      %v1459 = vsel %vm711, %v1416, %v1420
      %v1460 = vsel %vm711, %v1418, %v1422
      %v1461 = vsel %vm711, %v1444, %v1416
      %v1462 = vsel %vm711, %v1446, %v1418
      %v1463 = vsel %vm730, %v1459, 0.0
      %v1464 = vsel %vm731, %v1457, 0.0
      %v1465 = vsel %vm732, %v1455, 0.0
      %v1466 = vsel %vm733, %v1453, 0.0
      %v1467 = vsel %vm734, %v1451, 0.0
      %v1468 = vsel %vm735, %v1449, 0.0
      %v1469 = vsel %vm736, %v1447, 0.0
      %v1470 = vsel %vm737, %v1461, 0.0
      %v1471 = vsel %vm730, %v1460, 0.0
      %v1472 = vsel %vm731, %v1458, 0.0
      %v1473 = vsel %vm732, %v1456, 0.0
      %v1474 = vsel %vm733, %v1454, 0.0
      %v1475 = vsel %vm734, %v1452, 0.0
      %v1476 = vsel %vm735, %v1450, 0.0
      %v1477 = vsel %vm736, %v1448, 0.0
      %v1478 = vsel %vm737, %v1462, 0.0
      %v1479 = vld [vmem:[%s5] sm:$0xff]
      %v1480 = vld [vmem:[%s5 + $0x8] sm:$0xff]
      %v1481 = vld [vmem:[%s5 + $0x10] sm:$0xff]
      %v1482 = vld [vmem:[%s5 + $0x18] sm:$0xff]
      %v1483 = vld [vmem:[%s6] sm:$0xff]
      %v1484 = vld [vmem:[%s6 + $0x8] sm:$0xff]
      %1486 = vset.pattern.permute.xlu0 0
      %1487 = vperm.xlu0 %1486, %v1483
      %v1488 = vpop.permute.xlu0 %1487
      %1491 = vset.pattern.permute.xlu0 0
      %1492 = vperm.xlu0 %1491, %v1484
      %v1493 = vpop.permute.xlu0 %1492
      %vm1495 = vcmask 130048
      %v1497 = vsel %vm1495, %v1480, 0
      %v1500 = vsel %vm1495, %v1482, 0
      %1502 = vmatpush.msra.mxu0 %v1407
      %1503 = vmatpush.msra.mxu0 %v1399
      %1504 = vmatpush.msra.mxu0 %v1343
      %1505 = vmatpush.msra.mxu0 %v1335
      %1506 = vmatpush.msra.mxu0 %v1279
      %1507 = vmatpush.msra.mxu0 %v1271
      %1508 = vmatpush.msra.mxu0 %v959
      %1509 = vmatpush.msra.mxu0 %v951
      %1510 = vmatpush.msra.mxu0 %v1215
      %1511 = vmatpush.msra.mxu0 %v1207
      %1512 = vmatpush.msra.mxu0 %v1151
      %1513 = vmatpush.msra.mxu0 %v1143
      %1514 = vmatpush.msra.mxu0 %v1087
      %1515 = vmatpush.msra.mxu0 %v1079
      %1516 = vmatpush.msra.mxu0 %v1023
      %1517 = vmatpush.msra.mxu0 %v1015
      %1518 = vmatmul.f32.gmra.mxu0 %v1479
      %v1519 = vpop.f32.mrf.mxu0
      %v1520 = vadd.f32 %v1488, %v1519
      %1521 = vmatmul.f32.gmra.mxu0 %v1481
      %v1522 = vpop.f32.mrf.mxu0
      %v1523 = vadd.f32 %v1493, %v1522
      %1524 = vdwg.mxu0
      %1525 = vmatpush.msra.mxu0 0.0
      %1526 = vmatpush.msra.mxu0 0.0
      %1527 = vmatpush.msra.mxu0 0.0
      %1528 = vmatpush.msra.mxu0 0.0
      %1529 = vmatpush.msra.mxu0 0.0
      %1530 = vmatpush.msra.mxu0 0.0
      %1531 = vmatpush.msra.mxu0 0.0
      %1532 = vmatpush.msra.mxu0 0.0
      %1533 = vmatpush.msra.mxu0 0.0
      %1534 = vmatpush.msra.mxu0 0.0
      %1535 = vmatpush.msra.mxu0 0.0
      %1536 = vmatpush.msra.mxu0 0.0
      %1537 = vmatpush.msra.mxu0 0.0
      %1538 = vmatpush.msra.mxu0 0.0
      %1539 = vmatpush.msra.mxu0 %v1471
      %1540 = vmatpush.msra.mxu0 %v1463
      %1541 = vmatmul.f32.gmra.mxu0 %v1497
      %v1542 = vpop.f32.mrf.mxu0
      %v1543 = vadd.f32 %v1520, %v1542
      %1544 = vmatmul.f32.gmra.mxu0 %v1500
      %v1545 = vpop.f32.mrf.mxu0
      %v1546 = vadd.f32 %v1523, %v1545
      %1547 = vdwg.mxu0
      %1548 = vmatpush.msra.mxu0 %v1408
      %1549 = vmatpush.msra.mxu0 %v1400
      %1550 = vmatpush.msra.mxu0 %v1344
      %1551 = vmatpush.msra.mxu0 %v1336
      %1552 = vmatpush.msra.mxu0 %v1280
      %1553 = vmatpush.msra.mxu0 %v1272
      %1554 = vmatpush.msra.mxu0 %v960
      %1555 = vmatpush.msra.mxu0 %v952
      %1556 = vmatpush.msra.mxu0 %v1216
      %1557 = vmatpush.msra.mxu0 %v1208
      %1558 = vmatpush.msra.mxu0 %v1152
      %1559 = vmatpush.msra.mxu0 %v1144
      %1560 = vmatpush.msra.mxu0 %v1088
      %1561 = vmatpush.msra.mxu0 %v1080
      %1562 = vmatpush.msra.mxu0 %v1024
      %1563 = vmatpush.msra.mxu0 %v1016
      %1564 = vmatmul.f32.gmra.mxu0 %v1479
      %v1565 = vpop.f32.mrf.mxu0
      %v1566 = vadd.f32 %v1488, %v1565
      %1567 = vmatmul.f32.gmra.mxu0 %v1481
      %v1568 = vpop.f32.mrf.mxu0
      %v1569 = vadd.f32 %v1493, %v1568
      %1570 = vdwg.mxu0
      %1571 = vmatpush.msra.mxu0 0.0
      %1572 = vmatpush.msra.mxu0 0.0
      %1573 = vmatpush.msra.mxu0 0.0
      %1574 = vmatpush.msra.mxu0 0.0
      %1575 = vmatpush.msra.mxu0 0.0
      %1576 = vmatpush.msra.mxu0 0.0
      %1577 = vmatpush.msra.mxu0 0.0
      %1578 = vmatpush.msra.mxu0 0.0
      %1579 = vmatpush.msra.mxu0 0.0
      %1580 = vmatpush.msra.mxu0 0.0
      %1581 = vmatpush.msra.mxu0 0.0
      %1582 = vmatpush.msra.mxu0 0.0
      %1583 = vmatpush.msra.mxu0 0.0
      %1584 = vmatpush.msra.mxu0 0.0
      %1585 = vmatpush.msra.mxu0 %v1472
      %1586 = vmatpush.msra.mxu0 %v1464
      %1587 = vmatmul.f32.gmra.mxu0 %v1497
      %v1588 = vpop.f32.mrf.mxu0
      %v1589 = vadd.f32 %v1566, %v1588
      %1590 = vmatmul.f32.gmra.mxu0 %v1500
      %v1591 = vpop.f32.mrf.mxu0
      %v1592 = vadd.f32 %v1569, %v1591
      %1593 = vdwg.mxu0
      %1594 = vmatpush.msra.mxu0 %v1409
      %1595 = vmatpush.msra.mxu0 %v1401
      %1596 = vmatpush.msra.mxu0 %v1345
      %1597 = vmatpush.msra.mxu0 %v1337
      %1598 = vmatpush.msra.mxu0 %v1281
      %1599 = vmatpush.msra.mxu0 %v1273
      %1600 = vmatpush.msra.mxu0 %v961
      %1601 = vmatpush.msra.mxu0 %v953
      %1602 = vmatpush.msra.mxu0 %v1217
      %1603 = vmatpush.msra.mxu0 %v1209
      %1604 = vmatpush.msra.mxu0 %v1153
      %1605 = vmatpush.msra.mxu0 %v1145
      %1606 = vmatpush.msra.mxu0 %v1089
      %1607 = vmatpush.msra.mxu0 %v1081
      %1608 = vmatpush.msra.mxu0 %v1025
      %1609 = vmatpush.msra.mxu0 %v1017
      %1610 = vmatmul.f32.gmra.mxu0 %v1479
      %v1611 = vpop.f32.mrf.mxu0
      %v1612 = vadd.f32 %v1488, %v1611
      %1613 = vmatmul.f32.gmra.mxu0 %v1481
      %v1614 = vpop.f32.mrf.mxu0
      %v1615 = vadd.f32 %v1493, %v1614
      %1616 = vdwg.mxu0
      %1617 = vmatpush.msra.mxu0 0.0
      %1618 = vmatpush.msra.mxu0 0.0
      %1619 = vmatpush.msra.mxu0 0.0
      %1620 = vmatpush.msra.mxu0 0.0
      %1621 = vmatpush.msra.mxu0 0.0
      %1622 = vmatpush.msra.mxu0 0.0
      %1623 = vmatpush.msra.mxu0 0.0
      %1624 = vmatpush.msra.mxu0 0.0
      %1625 = vmatpush.msra.mxu0 0.0
      %1626 = vmatpush.msra.mxu0 0.0
      %1627 = vmatpush.msra.mxu0 0.0
      %1628 = vmatpush.msra.mxu0 0.0
      %1629 = vmatpush.msra.mxu0 0.0
      %1630 = vmatpush.msra.mxu0 0.0
      %1631 = vmatpush.msra.mxu0 %v1473
      %1632 = vmatpush.msra.mxu0 %v1465
      %1633 = vmatmul.f32.gmra.mxu0 %v1497
      %v1634 = vpop.f32.mrf.mxu0
      %v1635 = vadd.f32 %v1612, %v1634
      %1636 = vmatmul.f32.gmra.mxu0 %v1500
      %v1637 = vpop.f32.mrf.mxu0
      %v1638 = vadd.f32 %v1615, %v1637
      %1639 = vdwg.mxu0
      %1640 = vmatpush.msra.mxu0 %v1410
      %1641 = vmatpush.msra.mxu0 %v1402
      %1642 = vmatpush.msra.mxu0 %v1346
      %1643 = vmatpush.msra.mxu0 %v1338
      %1644 = vmatpush.msra.mxu0 %v1282
      %1645 = vmatpush.msra.mxu0 %v1274
      %1646 = vmatpush.msra.mxu0 %v962
      %1647 = vmatpush.msra.mxu0 %v954
      %1648 = vmatpush.msra.mxu0 %v1218
      %1649 = vmatpush.msra.mxu0 %v1210
      %1650 = vmatpush.msra.mxu0 %v1154
      %1651 = vmatpush.msra.mxu0 %v1146
      %1652 = vmatpush.msra.mxu0 %v1090
      %1653 = vmatpush.msra.mxu0 %v1082
      %1654 = vmatpush.msra.mxu0 %v1026
      %1655 = vmatpush.msra.mxu0 %v1018
      %1656 = vmatmul.f32.gmra.mxu0 %v1479
      %v1657 = vpop.f32.mrf.mxu0
      %v1658 = vadd.f32 %v1488, %v1657
      %1659 = vmatmul.f32.gmra.mxu0 %v1481
      %v1660 = vpop.f32.mrf.mxu0
      %v1661 = vadd.f32 %v1493, %v1660
      %1662 = vdwg.mxu0
      %1663 = vmatpush.msra.mxu0 0.0
      %1664 = vmatpush.msra.mxu0 0.0
      %1665 = vmatpush.msra.mxu0 0.0
      %1666 = vmatpush.msra.mxu0 0.0
      %1667 = vmatpush.msra.mxu0 0.0
      %1668 = vmatpush.msra.mxu0 0.0
      %1669 = vmatpush.msra.mxu0 0.0
      %1670 = vmatpush.msra.mxu0 0.0
      %1671 = vmatpush.msra.mxu0 0.0
      %1672 = vmatpush.msra.mxu0 0.0
      %1673 = vmatpush.msra.mxu0 0.0
      %1674 = vmatpush.msra.mxu0 0.0
      %1675 = vmatpush.msra.mxu0 0.0
      %1676 = vmatpush.msra.mxu0 0.0
      %1677 = vmatpush.msra.mxu0 %v1474
      %1678 = vmatpush.msra.mxu0 %v1466
      %1679 = vmatmul.f32.gmra.mxu0 %v1497
      %v1680 = vpop.f32.mrf.mxu0
      %v1681 = vadd.f32 %v1658, %v1680
      %1682 = vmatmul.f32.gmra.mxu0 %v1500
      %v1683 = vpop.f32.mrf.mxu0
      %v1684 = vadd.f32 %v1661, %v1683
      %1685 = vdwg.mxu0
      %1686 = vmatpush.msra.mxu0 %v1411
      %1687 = vmatpush.msra.mxu0 %v1403
      %1688 = vmatpush.msra.mxu0 %v1347
      %1689 = vmatpush.msra.mxu0 %v1339
      %1690 = vmatpush.msra.mxu0 %v1283
      %1691 = vmatpush.msra.mxu0 %v1275
      %1692 = vmatpush.msra.mxu0 %v963
      %1693 = vmatpush.msra.mxu0 %v955
      %1694 = vmatpush.msra.mxu0 %v1219
      %1695 = vmatpush.msra.mxu0 %v1211
      %1696 = vmatpush.msra.mxu0 %v1155
      %1697 = vmatpush.msra.mxu0 %v1147
      %1698 = vmatpush.msra.mxu0 %v1091
      %1699 = vmatpush.msra.mxu0 %v1083
      %1700 = vmatpush.msra.mxu0 %v1027
      %1701 = vmatpush.msra.mxu0 %v1019
      %1702 = vmatmul.f32.gmra.mxu0 %v1479
      %v1703 = vpop.f32.mrf.mxu0
      %v1704 = vadd.f32 %v1488, %v1703
      %1705 = vmatmul.f32.gmra.mxu0 %v1481
      %v1706 = vpop.f32.mrf.mxu0
      %v1707 = vadd.f32 %v1493, %v1706
      %1708 = vdwg.mxu0
      %1709 = vmatpush.msra.mxu0 0.0
      %1710 = vmatpush.msra.mxu0 0.0
      %1711 = vmatpush.msra.mxu0 0.0
      %1712 = vmatpush.msra.mxu0 0.0
      %1713 = vmatpush.msra.mxu0 0.0
      %1714 = vmatpush.msra.mxu0 0.0
      %1715 = vmatpush.msra.mxu0 0.0
      %1716 = vmatpush.msra.mxu0 0.0
      %1717 = vmatpush.msra.mxu0 0.0
      %1718 = vmatpush.msra.mxu0 0.0
      %1719 = vmatpush.msra.mxu0 0.0
      %1720 = vmatpush.msra.mxu0 0.0
      %1721 = vmatpush.msra.mxu0 0.0
      %1722 = vmatpush.msra.mxu0 0.0
      %1723 = vmatpush.msra.mxu0 %v1475
      %1724 = vmatpush.msra.mxu0 %v1467
      %1725 = vmatmul.f32.gmra.mxu0 %v1497
      %v1726 = vpop.f32.mrf.mxu0
      %v1727 = vadd.f32 %v1704, %v1726
      %1728 = vmatmul.f32.gmra.mxu0 %v1500
      %v1729 = vpop.f32.mrf.mxu0
      %v1730 = vadd.f32 %v1707, %v1729
      %1731 = vdwg.mxu0
      %1732 = vmatpush.msra.mxu0 %v1412
      %1733 = vmatpush.msra.mxu0 %v1404
      %1734 = vmatpush.msra.mxu0 %v1348
      %1735 = vmatpush.msra.mxu0 %v1340
      %1736 = vmatpush.msra.mxu0 %v1284
      %1737 = vmatpush.msra.mxu0 %v1276
      %1738 = vmatpush.msra.mxu0 %v964
      %1739 = vmatpush.msra.mxu0 %v956
      %1740 = vmatpush.msra.mxu0 %v1220
      %1741 = vmatpush.msra.mxu0 %v1212
      %1742 = vmatpush.msra.mxu0 %v1156
      %1743 = vmatpush.msra.mxu0 %v1148
      %1744 = vmatpush.msra.mxu0 %v1092
      %1745 = vmatpush.msra.mxu0 %v1084
      %1746 = vmatpush.msra.mxu0 %v1028
      %1747 = vmatpush.msra.mxu0 %v1020
      %1748 = vmatmul.f32.gmra.mxu0 %v1479
      %v1749 = vpop.f32.mrf.mxu0
      %v1750 = vadd.f32 %v1488, %v1749
      %1751 = vmatmul.f32.gmra.mxu0 %v1481
      %v1752 = vpop.f32.mrf.mxu0
      %v1753 = vadd.f32 %v1493, %v1752
      %1754 = vdwg.mxu0
      %1755 = vmatpush.msra.mxu0 0.0
      %1756 = vmatpush.msra.mxu0 0.0
      %1757 = vmatpush.msra.mxu0 0.0
      %1758 = vmatpush.msra.mxu0 0.0
      %1759 = vmatpush.msra.mxu0 0.0
      %1760 = vmatpush.msra.mxu0 0.0
      %1761 = vmatpush.msra.mxu0 0.0
      %1762 = vmatpush.msra.mxu0 0.0
      %1763 = vmatpush.msra.mxu0 0.0
      %1764 = vmatpush.msra.mxu0 0.0
      %1765 = vmatpush.msra.mxu0 0.0
      %1766 = vmatpush.msra.mxu0 0.0
      %1767 = vmatpush.msra.mxu0 0.0
      %1768 = vmatpush.msra.mxu0 0.0
      %1769 = vmatpush.msra.mxu0 %v1476
      %1770 = vmatpush.msra.mxu0 %v1468
      %1771 = vmatmul.f32.gmra.mxu0 %v1497
      %v1772 = vpop.f32.mrf.mxu0
      %v1773 = vadd.f32 %v1750, %v1772
      %1774 = vmatmul.f32.gmra.mxu0 %v1500
      %v1775 = vpop.f32.mrf.mxu0
      %v1776 = vadd.f32 %v1753, %v1775
      %1777 = vdwg.mxu0
      %1778 = vmatpush.msra.mxu0 %v1413
      %1779 = vmatpush.msra.mxu0 %v1405
      %1780 = vmatpush.msra.mxu0 %v1349
      %1781 = vmatpush.msra.mxu0 %v1341
      %1782 = vmatpush.msra.mxu0 %v1285
      %1783 = vmatpush.msra.mxu0 %v1277
      %1784 = vmatpush.msra.mxu0 %v965
      %1785 = vmatpush.msra.mxu0 %v957
      %1786 = vmatpush.msra.mxu0 %v1221
      %1787 = vmatpush.msra.mxu0 %v1213
      %1788 = vmatpush.msra.mxu0 %v1157
      %1789 = vmatpush.msra.mxu0 %v1149
      %1790 = vmatpush.msra.mxu0 %v1093
      %1791 = vmatpush.msra.mxu0 %v1085
      %1792 = vmatpush.msra.mxu0 %v1029
      %1793 = vmatpush.msra.mxu0 %v1021
      %1794 = vmatmul.f32.gmra.mxu0 %v1479
      %v1795 = vpop.f32.mrf.mxu0
      %v1796 = vadd.f32 %v1488, %v1795
      %1797 = vmatmul.f32.gmra.mxu0 %v1481
      %v1798 = vpop.f32.mrf.mxu0
      %v1799 = vadd.f32 %v1493, %v1798
      %1800 = vdwg.mxu0
      %1801 = vmatpush.msra.mxu0 0.0
      %1802 = vmatpush.msra.mxu0 0.0
      %1803 = vmatpush.msra.mxu0 0.0
      %1804 = vmatpush.msra.mxu0 0.0
      %1805 = vmatpush.msra.mxu0 0.0
      %1806 = vmatpush.msra.mxu0 0.0
      %1807 = vmatpush.msra.mxu0 0.0
      %1808 = vmatpush.msra.mxu0 0.0
      %1809 = vmatpush.msra.mxu0 0.0
      %1810 = vmatpush.msra.mxu0 0.0
      %1811 = vmatpush.msra.mxu0 0.0
      %1812 = vmatpush.msra.mxu0 0.0
      %1813 = vmatpush.msra.mxu0 0.0
      %1814 = vmatpush.msra.mxu0 0.0
      %1815 = vmatpush.msra.mxu0 %v1477
      %1816 = vmatpush.msra.mxu0 %v1469
      %1817 = vmatmul.f32.gmra.mxu0 %v1497
      %v1818 = vpop.f32.mrf.mxu0
      %v1819 = vadd.f32 %v1796, %v1818
      %1820 = vmatmul.f32.gmra.mxu0 %v1500
      %v1821 = vpop.f32.mrf.mxu0
      %v1822 = vadd.f32 %v1799, %v1821
      %1823 = vdwg.mxu0
      %1824 = vmatpush.msra.mxu0 %v1414
      %1825 = vmatpush.msra.mxu0 %v1406
      %1826 = vmatpush.msra.mxu0 %v1350
      %1827 = vmatpush.msra.mxu0 %v1342
      %1828 = vmatpush.msra.mxu0 %v1286
      %1829 = vmatpush.msra.mxu0 %v1278
      %1830 = vmatpush.msra.mxu0 %v966
      %1831 = vmatpush.msra.mxu0 %v958
      %1832 = vmatpush.msra.mxu0 %v1222
      %1833 = vmatpush.msra.mxu0 %v1214
      %1834 = vmatpush.msra.mxu0 %v1158
      %1835 = vmatpush.msra.mxu0 %v1150
      %1836 = vmatpush.msra.mxu0 %v1094
      %1837 = vmatpush.msra.mxu0 %v1086
      %1838 = vmatpush.msra.mxu0 %v1030
      %1839 = vmatpush.msra.mxu0 %v1022
      %1840 = vmatmul.f32.gmra.mxu0 %v1479
      %v1841 = vpop.f32.mrf.mxu0
      %v1842 = vadd.f32 %v1488, %v1841
      %1843 = vmatmul.f32.gmra.mxu0 %v1481
      %v1844 = vpop.f32.mrf.mxu0
      %v1845 = vadd.f32 %v1493, %v1844
      %1846 = vdwg.mxu0
      %1847 = vmatpush.msra.mxu0 0.0
      %1848 = vmatpush.msra.mxu0 0.0
      %1849 = vmatpush.msra.mxu0 0.0
      %1850 = vmatpush.msra.mxu0 0.0
      %1851 = vmatpush.msra.mxu0 0.0
      %1852 = vmatpush.msra.mxu0 0.0
      %1853 = vmatpush.msra.mxu0 0.0
      %1854 = vmatpush.msra.mxu0 0.0
      %1855 = vmatpush.msra.mxu0 0.0
      %1856 = vmatpush.msra.mxu0 0.0
      %1857 = vmatpush.msra.mxu0 0.0
      %1858 = vmatpush.msra.mxu0 0.0
      %1859 = vmatpush.msra.mxu0 0.0
      %1860 = vmatpush.msra.mxu0 0.0
      %1861 = vmatpush.msra.mxu0 %v1478
      %1862 = vmatpush.msra.mxu0 %v1470
      %1863 = vmatmul.f32.gmra.mxu0 %v1497
      %v1864 = vpop.f32.mrf.mxu0
      %v1865 = vadd.f32 %v1842, %v1864
      %1866 = vmatmul.f32.gmra.mxu0 %v1500
      %v1867 = vpop.f32.mrf.mxu0
      %v1868 = vadd.f32 %v1845, %v1867
      %1869 = vdwg.mxu0
      %v1870 = vmax.f32 %v1543, 0.0
      %v1871 = vmax.f32 %v1589, 0.0
      %v1872 = vmax.f32 %v1635, 0.0
      %v1873 = vmax.f32 %v1681, 0.0
      %v1874 = vmax.f32 %v1727, 0.0
      %v1875 = vmax.f32 %v1773, 0.0
      %v1876 = vmax.f32 %v1819, 0.0
      %v1877 = vmax.f32 %v1865, 0.0
      %v1878 = vmax.f32 %v1546, 0.0
      %v1879 = vmax.f32 %v1592, 0.0
      %v1880 = vmax.f32 %v1638, 0.0
      %v1881 = vmax.f32 %v1684, 0.0
      %v1882 = vmax.f32 %v1730, 0.0
      %v1883 = vmax.f32 %v1776, 0.0
      %v1884 = vmax.f32 %v1822, 0.0
      %v1885 = vmax.f32 %v1868, 0.0
      %v1886 = vld [vmem:[%s320] sm:$0xff]
      %v1887 = vld [vmem:[%s320 + $0x8] sm:$0xff]
      %v1888 = vld [vmem:[%s320 + $0x10] sm:$0xff]
      %v1889 = vld [vmem:[%s320 + $0x18] sm:$0xff]
      %v1890 = vld [vmem:[%s320 + $0x20] sm:$0xff]
      %v1891 = vld [vmem:[%s320 + $0x28] sm:$0xff]
      %v1892 = vld [vmem:[%s320 + $0x30] sm:$0xff]
      %v1893 = vld [vmem:[%s320 + $0x38] sm:$0xff]
      %v1894 = vld [vmem:[%s320 + $0x40] sm:$0xff]
      %v1895 = vld [vmem:[%s320 + $0x48] sm:$0xff]
      %v1896 = vld [vmem:[%s320 + $0x50] sm:$0xff]
      %v1897 = vld [vmem:[%s320 + $0x58] sm:$0xff]
      %v1898 = vld [vmem:[%s320 + $0x60] sm:$0xff]
      %v1899 = vld [vmem:[%s320 + $0x68] sm:$0xff]
      %v1900 = vld [vmem:[%s320 + $0x70] sm:$0xff]
      %v1901 = vld [vmem:[%s320 + $0x78] sm:$0xff]
      %v1902 = vadd.f32 %v1870, %v1886
      %v1903 = vadd.f32 %v1871, %v1887
      %v1904 = vadd.f32 %v1872, %v1888
      %v1905 = vadd.f32 %v1873, %v1889
      %v1906 = vadd.f32 %v1874, %v1890
      %v1907 = vadd.f32 %v1875, %v1891
      %v1908 = vadd.f32 %v1876, %v1892
      %v1909 = vadd.f32 %v1877, %v1893
      %v1910 = vadd.f32 %v1878, %v1894
      %v1911 = vadd.f32 %v1879, %v1895
      %v1912 = vadd.f32 %v1880, %v1896
      %v1913 = vadd.f32 %v1881, %v1897
      %v1914 = vadd.f32 %v1882, %v1898
      %v1915 = vadd.f32 %v1883, %v1899
      %v1916 = vadd.f32 %v1884, %v1900
      %v1917 = vadd.f32 %v1885, %v1901
      %1918 = vst [vmem:[%s325] sm:$0xff] %v1902
      %1919 = vst [vmem:[%s325 + $0x8] sm:$0xff] %v1903
      %1920 = vst [vmem:[%s325 + $0x10] sm:$0xff] %v1904
      %1921 = vst [vmem:[%s325 + $0x18] sm:$0xff] %v1905
      %1922 = vst [vmem:[%s325 + $0x20] sm:$0xff] %v1906
      %1923 = vst [vmem:[%s325 + $0x28] sm:$0xff] %v1907
      %1924 = vst [vmem:[%s325 + $0x30] sm:$0xff] %v1908
      %1925 = vst [vmem:[%s325 + $0x38] sm:$0xff] %v1909
      %1926 = vst [vmem:[%s325 + $0x40] sm:$0xff] %v1910
      %1927 = vst [vmem:[%s325 + $0x48] sm:$0xff] %v1911
      %1928 = vst [vmem:[%s325 + $0x50] sm:$0xff] %v1912
      %1929 = vst [vmem:[%s325 + $0x58] sm:$0xff] %v1913
      %1930 = vst [vmem:[%s325 + $0x60] sm:$0xff] %v1914
      %1931 = vst [vmem:[%s325 + $0x68] sm:$0xff] %v1915
      %1932 = vst [vmem:[%s325 + $0x70] sm:$0xff] %v1916
      %1933 = vst [vmem:[%s325 + $0x78] sm:$0xff] %v1917
      %p1934 = scmp.lt.s32.totalorder %s19, 1
      %s1935 = scalar_select %p1934, %s19, 1
      %s1936 = smul.addr %s1935, 16
      %s1937 = smul.addr %s1936, 8
      %s1938 = scalar_lea.vmem %s8, %s1937
      // Predicated region
      $region53: #{unet_up_block_forward.3} parent=51 // pred_check
        %p1939 = pneg %p215
      $region54: #{unet_up_block_forward.3} parent=51 // pred_check_branch
        %1941 = sbr.rel (%p1939) target = $region56
      $region55: #{unet_up_block_forward.3} parent=51 // pred_region
        _
      $region56: #{unet_up_block_forward.3} parent=51 // pred_fallthru
        _
    $region52: #{unet_up_block_forward.3} parent=5 // pred_fallthru
      _
    %p1942 = scmp.le.s32.totalorder 2, %s14
    // Predicated region
    $region57: #{unet_up_block_forward.3} parent=5 // pred_check
      %p1943 = pneg %p1942
    $region58: #{unet_up_block_forward.3} parent=5 // pred_check_branch
      %1945 = sbr.rel (%p1943) target = $region60
    $region59: #{unet_up_block_forward.3} parent=5 // pred_region
      %s1946 = ssub.s32 %s14, 2
      // Predicated region
      $region61: #{unet_up_block_forward.3} parent=59 // pred_check
        %p1947 = pneg %p221
      $region62: #{unet_up_block_forward.3} parent=59 // pred_check_branch
        %1949 = sbr.rel (%p1947) target = $region64
      $region63: #{unet_up_block_forward.3} parent=59 // pred_region
        %p1950 = scmp.lt.s32.totalorder %s20, 1
        %s1951 = scalar_select %p1950, %s20, 1
        %s1952 = smul.addr %s1951, 16
        %s1953 = smul.addr %s1952, 8
        %s1954 = scalar_lea.vmem %s8, %s1953
      $region64: #{unet_up_block_forward.3} parent=59 // pred_fallthru
        _
    $region60: #{unet_up_block_forward.3} parent=5 // pred_fallthru
      _
  $region6: #{unet_up_block_forward.3} parent=0 // loop_footer
    %s18 = sadd.s32 1, %s14
  $region7: #{unet_up_block_forward.3} parent=0 // loop_footer_branch
    %13 = sbr.rel target = $region3
  $region8: #{unet_up_block_forward.3} parent=0 // loop_exit
    _

</llo_original>
